<compile_context>
chip_gen: v5e
topology: v5e:2x2
jax: 0.10.0
libtpu: 0.0.40
codegen_flags: <defaults>
</compile_context>

<pallas_src>
import math
import functools

import jax
import jax.numpy as jnp
from jax import lax
from jax.experimental import pallas as pl
from jax.experimental.pallas import tpu as pltpu


# ----------------------------- helpers ---------------------------------------


def _vmem_limit_bytes():
    """Generation-aware scoped-VMEM limit (headroom below physical capacity)."""
    try:
        info = pltpu.get_tpu_info()
        cap = int(getattr(info, "vmem_capacity_bytes", 64 * 1024 * 1024))
    except Exception:
        cap = 64 * 1024 * 1024          # conservative (v7x per-TC) default
    return max(32 * 1024 * 1024, min(cap - 8 * 1024 * 1024, 100 * 1024 * 1024))


def _layer_norm(x, w, b, eps, approx):
    # Matches the module's custom LayerNorm exactly:
    #   w * (x - mean) / (std + eps) + b, with torch's UNBIASED std (divide by D-1).
    d = x.shape[-1]
    mean = jnp.mean(x, axis=-1, keepdims=True)
    var = jnp.sum((x - mean) ** 2, axis=-1, keepdims=True) * (1.0 / (d - 1))
    denom = jnp.sqrt(var) + eps
    if approx:
        return w * ((x - mean) * pl.reciprocal(denom, approx=True)) + b
    return w * ((x - mean) / denom) + b


# ----------------------------- kernel -----------------------------------------


def encoder_layer_kernel(x_ref, mask_ref,
                         wqkv_ref, bqkv_ref, wo_ref,
                         w1_ref, b1_ref, w2_ref, vec_ref,
                         out_ref,
                         *, num_head, eps, compute_dtype, approx_ln):
    f32 = jnp.float32
    x = x_ref[0]                       # (S, D) float32
    S, D = x.shape
    dk = D // num_head

    # Additive mask bias, built once from the compact int8 mask (0 == masked).
    mask_bias = jnp.where(mask_ref[0].astype(f32) == 0.0, -1000000000.0, 0.0)  # (S, S)

    # --- Multi-head self-attention ----------------------------------------
    # Fused QKV projection (1/sqrt(dk) already folded into the Q weight columns).
    xc = x.astype(compute_dtype)
    qkv = jnp.dot(xc, wqkv_ref[...], preferred_element_type=f32) + bqkv_ref[...]
    q = qkv[:, :D].astype(compute_dtype)
    k = qkv[:, D:2 * D].astype(compute_dtype)
    v = qkv[:, 2 * D:].astype(compute_dtype)

    # Per-head attention with the output projection fused into the loop:
    # concat_h(p_h @ v_h) @ wo == sum_h (p_h @ v_h) @ wo[h*dk:(h+1)*dk, :].
    # The accumulator is a lane-dense (S, D) f32 value (no masked partial stores).
    # TODO(synk): group heads into one batched MXU matmul for large H/dk.
    dimnums = (((1,), (1,)), ((), ()))     # contract dim 1 of q with dim 1 of k (no kh.T)
    acc = jnp.zeros((S, D), f32)
    for h in range(num_head):               # static unroll, H is small
        sl = slice(h * dk, (h + 1) * dk)
        scores = lax.dot_general(q[:, sl], k[:, sl], dimnums,
                                 preferred_element_type=f32) + mask_bias
        scores = scores - jnp.max(scores, axis=-1, keepdims=True)
        e = jnp.exp(scores)
        # EUP approx reciprocal for the softmax denominator on all dtype paths.
        p = e * pl.reciprocal(jnp.sum(e, axis=-1, keepdims=True), approx=True)
        # TODO(synk): attention dropout omitted (inference/eval semantics).
        ctx = jnp.dot(p.astype(compute_dtype), v[:, sl], preferred_element_type=f32)
        acc = acc + jnp.dot(ctx.astype(compute_dtype), wo_ref[sl, :],
                            preferred_element_type=f32)

    bo, b2 = vec_ref[0:1, :], vec_ref[1:2, :]
    ln1w, ln1b = vec_ref[2:3, :], vec_ref[3:4, :]
    ln2w, ln2b = vec_ref[4:5, :], vec_ref[5:6, :]

    x1 = _layer_norm(x + (acc + bo), ln1w, ln1b, eps, approx_ln)

    # --- Feed-forward -------------------------------------------------------
    h1 = jnp.maximum(
        jnp.dot(x1.astype(compute_dtype), w1_ref[...], preferred_element_type=f32)
        + b1_ref[...], 0.0)
    # TODO(synk): feed-forward dropout omitted (inference/eval semantics).
    ff = jnp.dot(h1.astype(compute_dtype), w2_ref[...], preferred_element_type=f32) + b2

    out_ref[0] = _layer_norm(x1 + ff, ln2w, ln2b, eps, approx_ln)


# ----------------------------- wrappers ----------------------------------------


def _fuse_layer_params(p, num_head, compute_dtype):
    """Fuse QKV weights/biases (with 1/sqrt(dk) folded into Q, in f32),
    coalesce the small (1, D) vectors into one (6, D) input."""
    d_model = p["wq"].shape[0]
    scale = 1.0 / math.sqrt(d_model // num_head)
    wq = p["wq"] * scale
    bq = p["bq"] * scale
    return {
        "wqkv": jnp.concatenate([wq, p["wk"], p["wv"]], axis=1).astype(compute_dtype),
        "bqkv": jnp.concatenate([bq, p["bk"], p["bv"]], axis=1).astype(jnp.float32),
        "wo": p["wo"].astype(compute_dtype),
        "w1": p["w1"].astype(compute_dtype),
        "b1": p["b1"].astype(jnp.float32),
        "w2": p["w2"].astype(compute_dtype),
        # rows: [bo, b2, ln1w, ln1b, ln2w, ln2b]
        "vecs": jnp.concatenate(
            [p["bo"], p["b2"], p["ln1w"], p["ln1b"], p["ln2w"], p["ln2b"]],
            axis=0).astype(jnp.float32),
    }


def encoder_layer(x, mask_i8, fp, num_head, *, compute_dtype=jnp.bfloat16,
                  eps=1e-6, single_buffer_weights=False):
    B, S, D = x.shape
    d_ff = fp["w1"].shape[1]

    def wspec(shape):
        # Weight blocks never change across the grid -> single-buffer them when possible.
        n = len(shape)
        idx = lambda b, _n=n: (0,) * _n
        if single_buffer_weights:
            return pl.BlockSpec(shape, idx, pipeline_mode=pl.Buffered(1))
        return pl.BlockSpec(shape, idx)

    in_specs = [
        pl.BlockSpec((1, S, D), lambda b: (b, 0, 0)),   # x
        pl.BlockSpec((1, S, S), lambda b: (b, 0, 0)),   # mask (int8, compact)
        wspec((D, 3 * D)),     # wqkv (fused, Q pre-scaled)
        wspec((1, 3 * D)),     # bqkv (fused, Q bias pre-scaled)
        wspec((D, D)),         # wo
        wspec((D, d_ff)),      # w1
        wspec((1, d_ff)),      # b1
        wspec((d_ff, D)),      # w2
        wspec((6, D)),         # coalesced [bo, b2, ln1w, ln1b, ln2w, ln2b]
    ]

    kernel = functools.partial(
        encoder_layer_kernel,
        num_head=num_head, eps=eps, compute_dtype=compute_dtype,
        approx_ln=(compute_dtype != jnp.float32))

    return pl.pallas_call(
        kernel,
        out_shape=jax.ShapeDtypeStruct((B, S, D), jnp.float32),
        grid_spec=pltpu.PrefetchScalarGridSpec(
            num_scalar_prefetch=0,
            grid=(B,),
            in_specs=in_specs,
            out_specs=pl.BlockSpec((1, S, D), lambda b: (b, 0, 0)),
        ),
        compiler_params=pltpu.CompilerParams(
            dimension_semantics=("parallel",),          # batch elems independent
            vmem_limit_bytes=_vmem_limit_bytes()),
    )(x, mask_i8, fp["wqkv"], fp["bqkv"], fp["wo"], fp["w1"], fp["b1"], fp["w2"],
      fp["vecs"])


# Lazily probed: does this runtime accept pipeline_mode=pl.Buffered(1)?
_BUFFERED1_OK = [None]


def _apply_layer(x, mask_i8, fp, num_head, compute_dtype):
    if _BUFFERED1_OK[0] is None:
        try:
            y = encoder_layer(x, mask_i8, fp, num_head,
                              compute_dtype=compute_dtype, single_buffer_weights=True)
            jax.block_until_ready(y)
            _BUFFERED1_OK[0] = True
            return y
        except Exception:
            _BUFFERED1_OK[0] = False
    if _BUFFERED1_OK[0]:
        return encoder_layer(x, mask_i8, fp, num_head,
                             compute_dtype=compute_dtype, single_buffer_weights=True)
    return encoder_layer(x, mask_i8, fp, num_head,
                         compute_dtype=compute_dtype, single_buffer_weights=False)


def encoder_forward(x, mask, layers, num_head, *, compute_dtype=jnp.bfloat16):
    # TODO(synk): cross-layer weight prefetch (cross-pallas_call DMA futures),
    # flash-style S tiling and B*S-flattened projections are not needed at these shapes.
    fused = [_fuse_layer_params(p, num_head, compute_dtype) for p in layers]
    mask_i8 = (mask != 0.0).astype(jnp.int8)     # compact mask: 4x less HBM traffic
    for fp in fused:
        x = _apply_layer(x, mask_i8, fp, num_head, compute_dtype)
    return x


# ----------------------------- reference (plain JAX) ---------------------------


def _ref_layer_norm(x, w, b, eps=1e-6):
    d = x.shape[-1]
    mean = jnp.mean(x, axis=-1, keepdims=True)
    std = jnp.sqrt(jnp.sum((x - mean) ** 2, axis=-1, keepdims=True) / (d - 1))
    return w * (x - mean) / (std + eps) + b


def ref_forward(x, mask, layers, num_head):
    for p in layers:
        B, S, D = x.shape
        dk = D // num_head
        q = (x @ p["wq"] + p["bq"][0]).reshape(B, S, num_head, dk).transpose(0, 2, 1, 3)
        k = (x @ p["wk"] + p["bk"][0]).reshape(B, S, num_head, dk).transpose(0, 2, 1, 3)
        v = (x @ p["wv"] + p["bv"][0]).reshape(B, S, num_head, dk).transpose(0, 2, 1, 3)
        scores = jnp.einsum("bhqd,bhkd->bhqk", q, k) / math.sqrt(dk)
        scores = jnp.where(mask[:, None, :, :] == 0.0, -1000000000.0, scores)
        p_attn = jax.nn.softmax(scores, axis=-1)
        o = jnp.einsum("bhqk,bhkd->bhqd", p_attn, v).transpose(0, 2, 1, 3).reshape(B, S, D)
        o = o @ p["wo"] + p["bo"][0]
        x1 = _ref_layer_norm(x + o, p["ln1w"][0], p["ln1b"][0])
        ff = jnp.maximum(x1 @ p["w1"] + p["b1"][0], 0.0) @ p["w2"] + p["b2"][0]
        x = _ref_layer_norm(x1 + ff, p["ln2w"][0], p["ln2b"][0])
    return x


# ----------------------------- params -------------------------------------------


def init_params(key, num_layer, d_model, d_ff):
    layers = []
    for _ in range(num_layer):
        key, *ks = jax.random.split(key, 13)
        r = lambda k, shape, s=0.05: (jax.random.normal(k, shape, jnp.float32) * s)
        layers.append({
            "wq": r(ks[0], (d_model, d_model)), "bq": r(ks[1], (1, d_model)),
            "wk": r(ks[2], (d_model, d_model)), "bk": r(ks[3], (1, d_model)),
            "wv": r(ks[4], (d_model, d_model)), "bv": r(ks[5], (1, d_model)),
            "wo": r(ks[6], (d_model, d_model)), "bo": r(ks[7], (1, d_model)),
            "w1": r(ks[8], (d_model, d_ff)),    "b1": r(ks[9], (1, d_ff)),
            "w2": r(ks[10], (d_ff, d_model)),   "b2": r(ks[11], (1, d_model)),
            "ln1w": jnp.ones((1, d_model), jnp.float32),
            "ln1b": jnp.zeros((1, d_model), jnp.float32),
            "ln2w": jnp.ones((1, d_model), jnp.float32),
            "ln2b": jnp.zeros((1, d_model), jnp.float32),
        })
    return layers


# ----------------------------- main ----------------------------------------------


if __name__ == "__main__":
    B, S, D, H, D_FF, NUM_LAYER = 2, 8, 32, 4, 64, 2

    key = jax.random.PRNGKey(0)
    key, kx = jax.random.split(key)
    x = jax.random.normal(kx, (B, S, D), jnp.float32)

    # mask: (B, S, S), 1.0 = attend, 0.0 = masked (last two keys masked for batch 1)
    mask = jnp.ones((B, S, S), jnp.float32)
    mask = mask.at[1, :, S - 2:].set(0.0)

    layers = init_params(key, NUM_LAYER, D, D_FF)

    ref = ref_forward(x, mask, layers, H)

    # f32 matmul-input path.  Tolerance allows for the EUP approx reciprocal in
    # the softmax denominator (used on all dtype paths for the free EUP slot).
    out = jax.block_until_ready(
        encoder_forward(x, mask, layers, H, compute_dtype=jnp.float32))
    assert out.shape == (B, S, D)
    assert jnp.allclose(out, ref, atol=1e-2, rtol=1e-2), (
        f"f32 max abs diff {jnp.max(jnp.abs(out - ref))}")

    # bf16 matmul-input path (full-rate MXU, half the weight DMA, approx recip
    # also inside LayerNorm): looser tolerance.
    out_bf16 = jax.block_until_ready(
        encoder_forward(x, mask, layers, H, compute_dtype=jnp.bfloat16))
    assert jnp.allclose(out_bf16, ref, atol=5e-2, rtol=5e-2), (
        f"bf16 max abs diff {jnp.max(jnp.abs(out_bf16 - ref))}")

    print("KERNEL_OK")
</pallas_src>

<mosaic_0001>
module attributes {stable_mosaic.version = 11 : i64} {
  func.func @encoder_layer_kernel(%arg0: i32, %arg1: memref<1x8x32xf32, #tpu.memory_space<vmem>>, %arg2: memref<1x8x8xi8, #tpu.memory_space<vmem>>, %arg3: memref<32x96xf32, #tpu.memory_space<vmem>>, %arg4: memref<1x96xf32, #tpu.memory_space<vmem>>, %arg5: memref<32x32xf32, #tpu.memory_space<vmem>>, %arg6: memref<32x64xf32, #tpu.memory_space<vmem>>, %arg7: memref<1x64xf32, #tpu.memory_space<vmem>>, %arg8: memref<64x32xf32, #tpu.memory_space<vmem>>, %arg9: memref<6x32xf32, #tpu.memory_space<vmem>>, %arg10: memref<1x8x32xf32, #tpu.memory_space<vmem>>) attributes {dimension_semantics = [#tpu.dimension_semantics<parallel>], iteration_bounds = array<i64: 2>, scalar_prefetch = 0 : i64, scratch_operands = 0 : i64, tpu.core_type = #tpu.core_type<tc>, window_params = [{transform_indices = @transform_0, window_bounds = array<i64: 1, 8, 32>}, {transform_indices = @transform_1, window_bounds = array<i64: 1, 8, 8>}, {pipeline_mode = #tpu.pipeline_mode<synchronous>, transform_indices = @transform_2, window_bounds = array<i64: 32, 96>}, {pipeline_mode = #tpu.pipeline_mode<synchronous>, transform_indices = @transform_3, window_bounds = array<i64: 1, 96>}, {pipeline_mode = #tpu.pipeline_mode<synchronous>, transform_indices = @transform_4, window_bounds = array<i64: 32, 32>}, {pipeline_mode = #tpu.pipeline_mode<synchronous>, transform_indices = @transform_5, window_bounds = array<i64: 32, 64>}, {pipeline_mode = #tpu.pipeline_mode<synchronous>, transform_indices = @transform_6, window_bounds = array<i64: 1, 64>}, {pipeline_mode = #tpu.pipeline_mode<synchronous>, transform_indices = @transform_7, window_bounds = array<i64: 64, 32>}, {pipeline_mode = #tpu.pipeline_mode<synchronous>, transform_indices = @transform_8, window_bounds = array<i64: 6, 32>}, {transform_indices = @transform_9, window_bounds = array<i64: 1, 8, 32>}]} {
    %c0 = arith.constant 0 : index
    %c0_0 = arith.constant 0 : index
    %c0_1 = arith.constant 0 : index
    %0 = vector.load %arg1[%c0, %c0_0, %c0_1] : memref<1x8x32xf32, #tpu.memory_space<vmem>>, vector<1x8x32xf32>
    %1 = vector.shape_cast %0 : vector<1x8x32xf32> to vector<8x32xf32>
    %c0_2 = arith.constant 0 : index
    %c0_3 = arith.constant 0 : index
    %c0_4 = arith.constant 0 : index
    %2 = vector.load %arg2[%c0_2, %c0_3, %c0_4] : memref<1x8x8xi8, #tpu.memory_space<vmem>>, vector<1x8x8xi8>
    %3 = vector.shape_cast %2 : vector<1x8x8xi8> to vector<8x8xi8>
    %4 = arith.sitofp %3 : vector<8x8xi8> to vector<8x8xf32>
    %cst = arith.constant 0.000000e+00 : f32
    %5 = vector.broadcast %cst : f32 to vector<8x8xf32>
    %6 = arith.cmpf oeq, %4, %5 : vector<8x8xf32>
    %cst_5 = arith.constant -1.000000e+09 : f32
    %cst_6 = arith.constant 0.000000e+00 : f32
    %7 = vector.broadcast %cst_5 : f32 to vector<8x8xf32>
    %8 = vector.broadcast %cst_6 : f32 to vector<8x8xf32>
    %9 = arith.select %6, %7, %8 : vector<8x8xi1>, vector<8x8xf32>
    %c0_7 = arith.constant 0 : index
    %c0_8 = arith.constant 0 : index
    %10 = vector.load %arg3[%c0_7, %c0_8] : memref<32x96xf32, #tpu.memory_space<vmem>>, vector<32x96xf32>
    %cst_9 = arith.constant dense<0.000000e+00> : vector<8x96xf32>
    %11 = tpu.matmul %1, %10, %cst_9 {dimension_numbers = #tpu.dot_dimension_numbers<[1], [0], [0], [1], [0, 0, 1, 1], [], []>} : vector<8x32xf32>, vector<32x96xf32>, vector<8x96xf32> -> vector<8x96xf32>
    %c0_10 = arith.constant 0 : index
    %c0_11 = arith.constant 0 : index
    %12 = vector.load %arg4[%c0_10, %c0_11] : memref<1x96xf32, #tpu.memory_space<vmem>>, vector<1x96xf32>
    %13 = vector.broadcast %12 : vector<1x96xf32> to vector<8x96xf32>
    %14 = arith.addf %11, %13 : vector<8x96xf32>
    %15 = vector.extract_strided_slice %14 {offsets = [0, 0], sizes = [8, 32], strides = [1, 1]} : vector<8x96xf32> to vector<8x32xf32>
    %16 = vector.extract_strided_slice %14 {offsets = [0, 32], sizes = [8, 32], strides = [1, 1]} : vector<8x96xf32> to vector<8x32xf32>
    %17 = vector.extract_strided_slice %14 {offsets = [0, 64], sizes = [8, 32], strides = [1, 1]} : vector<8x96xf32> to vector<8x32xf32>
    %cst_12 = arith.constant 0.000000e+00 : f32
    %18 = vector.broadcast %cst_12 : f32 to vector<8x32xf32>
    %19 = vector.extract_strided_slice %15 {offsets = [0, 0], sizes = [8, 8], strides = [1, 1]} : vector<8x32xf32> to vector<8x8xf32>
    %20 = vector.extract_strided_slice %16 {offsets = [0, 0], sizes = [8, 8], strides = [1, 1]} : vector<8x32xf32> to vector<8x8xf32>
    %cst_13 = arith.constant dense<0.000000e+00> : vector<8x8xf32>
    %21 = tpu.matmul %19, %20, %cst_13 {dimension_numbers = #tpu.dot_dimension_numbers<[1], [1], [0], [0], [0, 0, 1, 0], [], []>} : vector<8x8xf32>, vector<8x8xf32>, vector<8x8xf32> -> vector<8x8xf32>
    %22 = arith.addf %21, %9 : vector<8x8xf32>
    %cst_14 = arith.constant dense<0xFF800000> : vector<8xf32>
    %23 = vector.multi_reduction <maximumf>, %22, %cst_14 [1] : vector<8x8xf32> to vector<8xf32>
    %24 = vector.shape_cast %23 : vector<8xf32> to vector<8x1xf32>
    %25 = vector.broadcast %24 : vector<8x1xf32> to vector<8x8xf32>
    %26 = arith.subf %22, %25 : vector<8x8xf32>
    %27 = math.exp %26 : vector<8x8xf32>
    %cst_15 = arith.constant dense<0.000000e+00> : vector<8xf32>
    %28 = vector.multi_reduction <add>, %27, %cst_15 [1] : vector<8x8xf32> to vector<8xf32>
    %29 = vector.shape_cast %28 : vector<8xf32> to vector<8x1xf32>
    %30 = tpu.reciprocal %29 {approx = true} : vector<8x1xf32> -> vector<8x1xf32>
    %31 = vector.broadcast %30 : vector<8x1xf32> to vector<8x8xf32>
    %32 = arith.mulf %27, %31 : vector<8x8xf32>
    %33 = vector.extract_strided_slice %17 {offsets = [0, 0], sizes = [8, 8], strides = [1, 1]} : vector<8x32xf32> to vector<8x8xf32>
    %cst_16 = arith.constant dense<0.000000e+00> : vector<8x8xf32>
    %34 = tpu.matmul %32, %33, %cst_16 {dimension_numbers = #tpu.dot_dimension_numbers<[1], [0], [0], [1], [0, 0, 1, 1], [], []>} : vector<8x8xf32>, vector<8x8xf32>, vector<8x8xf32> -> vector<8x8xf32>
    %c0_17 = arith.constant 0 : index
    %c0_18 = arith.constant 0 : index
    %35 = vector.load %arg5[%c0_17, %c0_18] : memref<32x32xf32, #tpu.memory_space<vmem>>, vector<8x32xf32>
    %cst_19 = arith.constant dense<0.000000e+00> : vector<8x32xf32>
    %36 = tpu.matmul %34, %35, %cst_19 {dimension_numbers = #tpu.dot_dimension_numbers<[1], [0], [0], [1], [0, 0, 1, 1], [], []>} : vector<8x8xf32>, vector<8x32xf32>, vector<8x32xf32> -> vector<8x32xf32>
    %37 = arith.addf %18, %36 : vector<8x32xf32>
    %38 = vector.extract_strided_slice %15 {offsets = [0, 8], sizes = [8, 8], strides = [1, 1]} : vector<8x32xf32> to vector<8x8xf32>
    %39 = vector.extract_strided_slice %16 {offsets = [0, 8], sizes = [8, 8], strides = [1, 1]} : vector<8x32xf32> to vector<8x8xf32>
    %cst_20 = arith.constant dense<0.000000e+00> : vector<8x8xf32>
    %40 = tpu.matmul %38, %39, %cst_20 {dimension_numbers = #tpu.dot_dimension_numbers<[1], [1], [0], [0], [0, 0, 1, 0], [], []>} : vector<8x8xf32>, vector<8x8xf32>, vector<8x8xf32> -> vector<8x8xf32>
    %41 = arith.addf %40, %9 : vector<8x8xf32>
    %cst_21 = arith.constant dense<0xFF800000> : vector<8xf32>
    %42 = vector.multi_reduction <maximumf>, %41, %cst_21 [1] : vector<8x8xf32> to vector<8xf32>
    %43 = vector.shape_cast %42 : vector<8xf32> to vector<8x1xf32>
    %44 = vector.broadcast %43 : vector<8x1xf32> to vector<8x8xf32>
    %45 = arith.subf %41, %44 : vector<8x8xf32>
    %46 = math.exp %45 : vector<8x8xf32>
    %cst_22 = arith.constant dense<0.000000e+00> : vector<8xf32>
    %47 = vector.multi_reduction <add>, %46, %cst_22 [1] : vector<8x8xf32> to vector<8xf32>
    %48 = vector.shape_cast %47 : vector<8xf32> to vector<8x1xf32>
    %49 = tpu.reciprocal %48 {approx = true} : vector<8x1xf32> -> vector<8x1xf32>
    %50 = vector.broadcast %49 : vector<8x1xf32> to vector<8x8xf32>
    %51 = arith.mulf %46, %50 : vector<8x8xf32>
    %52 = vector.extract_strided_slice %17 {offsets = [0, 8], sizes = [8, 8], strides = [1, 1]} : vector<8x32xf32> to vector<8x8xf32>
    %cst_23 = arith.constant dense<0.000000e+00> : vector<8x8xf32>
    %53 = tpu.matmul %51, %52, %cst_23 {dimension_numbers = #tpu.dot_dimension_numbers<[1], [0], [0], [1], [0, 0, 1, 1], [], []>} : vector<8x8xf32>, vector<8x8xf32>, vector<8x8xf32> -> vector<8x8xf32>
    %c8 = arith.constant 8 : index
    %c0_24 = arith.constant 0 : index
    %54 = vector.load %arg5[%c8, %c0_24] : memref<32x32xf32, #tpu.memory_space<vmem>>, vector<8x32xf32>
    %cst_25 = arith.constant dense<0.000000e+00> : vector<8x32xf32>
    %55 = tpu.matmul %53, %54, %cst_25 {dimension_numbers = #tpu.dot_dimension_numbers<[1], [0], [0], [1], [0, 0, 1, 1], [], []>} : vector<8x8xf32>, vector<8x32xf32>, vector<8x32xf32> -> vector<8x32xf32>
    %56 = arith.addf %37, %55 : vector<8x32xf32>
    %57 = vector.extract_strided_slice %15 {offsets = [0, 16], sizes = [8, 8], strides = [1, 1]} : vector<8x32xf32> to vector<8x8xf32>
    %58 = vector.extract_strided_slice %16 {offsets = [0, 16], sizes = [8, 8], strides = [1, 1]} : vector<8x32xf32> to vector<8x8xf32>
    %cst_26 = arith.constant dense<0.000000e+00> : vector<8x8xf32>
    %59 = tpu.matmul %57, %58, %cst_26 {dimension_numbers = #tpu.dot_dimension_numbers<[1], [1], [0], [0], [0, 0, 1, 0], [], []>} : vector<8x8xf32>, vector<8x8xf32>, vector<8x8xf32> -> vector<8x8xf32>
    %60 = arith.addf %59, %9 : vector<8x8xf32>
    %cst_27 = arith.constant dense<0xFF800000> : vector<8xf32>
    %61 = vector.multi_reduction <maximumf>, %60, %cst_27 [1] : vector<8x8xf32> to vector<8xf32>
    %62 = vector.shape_cast %61 : vector<8xf32> to vector<8x1xf32>
    %63 = vector.broadcast %62 : vector<8x1xf32> to vector<8x8xf32>
    %64 = arith.subf %60, %63 : vector<8x8xf32>
    %65 = math.exp %64 : vector<8x8xf32>
    %cst_28 = arith.constant dense<0.000000e+00> : vector<8xf32>
    %66 = vector.multi_reduction <add>, %65, %cst_28 [1] : vector<8x8xf32> to vector<8xf32>
    %67 = vector.shape_cast %66 : vector<8xf32> to vector<8x1xf32>
    %68 = tpu.reciprocal %67 {approx = true} : vector<8x1xf32> -> vector<8x1xf32>
    %69 = vector.broadcast %68 : vector<8x1xf32> to vector<8x8xf32>
    %70 = arith.mulf %65, %69 : vector<8x8xf32>
    %71 = vector.extract_strided_slice %17 {offsets = [0, 16], sizes = [8, 8], strides = [1, 1]} : vector<8x32xf32> to vector<8x8xf32>
    %cst_29 = arith.constant dense<0.000000e+00> : vector<8x8xf32>
    %72 = tpu.matmul %70, %71, %cst_29 {dimension_numbers = #tpu.dot_dimension_numbers<[1], [0], [0], [1], [0, 0, 1, 1], [], []>} : vector<8x8xf32>, vector<8x8xf32>, vector<8x8xf32> -> vector<8x8xf32>
    %c16 = arith.constant 16 : index
    %c0_30 = arith.constant 0 : index
    %73 = vector.load %arg5[%c16, %c0_30] : memref<32x32xf32, #tpu.memory_space<vmem>>, vector<8x32xf32>
    %cst_31 = arith.constant dense<0.000000e+00> : vector<8x32xf32>
    %74 = tpu.matmul %72, %73, %cst_31 {dimension_numbers = #tpu.dot_dimension_numbers<[1], [0], [0], [1], [0, 0, 1, 1], [], []>} : vector<8x8xf32>, vector<8x32xf32>, vector<8x32xf32> -> vector<8x32xf32>
    %75 = arith.addf %56, %74 : vector<8x32xf32>
    %76 = vector.extract_strided_slice %15 {offsets = [0, 24], sizes = [8, 8], strides = [1, 1]} : vector<8x32xf32> to vector<8x8xf32>
    %77 = vector.extract_strided_slice %16 {offsets = [0, 24], sizes = [8, 8], strides = [1, 1]} : vector<8x32xf32> to vector<8x8xf32>
    %cst_32 = arith.constant dense<0.000000e+00> : vector<8x8xf32>
    %78 = tpu.matmul %76, %77, %cst_32 {dimension_numbers = #tpu.dot_dimension_numbers<[1], [1], [0], [0], [0, 0, 1, 0], [], []>} : vector<8x8xf32>, vector<8x8xf32>, vector<8x8xf32> -> vector<8x8xf32>
    %79 = arith.addf %78, %9 : vector<8x8xf32>
    %cst_33 = arith.constant dense<0xFF800000> : vector<8xf32>
    %80 = vector.multi_reduction <maximumf>, %79, %cst_33 [1] : vector<8x8xf32> to vector<8xf32>
    %81 = vector.shape_cast %80 : vector<8xf32> to vector<8x1xf32>
    %82 = vector.broadcast %81 : vector<8x1xf32> to vector<8x8xf32>
    %83 = arith.subf %79, %82 : vector<8x8xf32>
    %84 = math.exp %83 : vector<8x8xf32>
    %cst_34 = arith.constant dense<0.000000e+00> : vector<8xf32>
    %85 = vector.multi_reduction <add>, %84, %cst_34 [1] : vector<8x8xf32> to vector<8xf32>
    %86 = vector.shape_cast %85 : vector<8xf32> to vector<8x1xf32>
    %87 = tpu.reciprocal %86 {approx = true} : vector<8x1xf32> -> vector<8x1xf32>
    %88 = vector.broadcast %87 : vector<8x1xf32> to vector<8x8xf32>
    %89 = arith.mulf %84, %88 : vector<8x8xf32>
    %90 = vector.extract_strided_slice %17 {offsets = [0, 24], sizes = [8, 8], strides = [1, 1]} : vector<8x32xf32> to vector<8x8xf32>
    %cst_35 = arith.constant dense<0.000000e+00> : vector<8x8xf32>
    %91 = tpu.matmul %89, %90, %cst_35 {dimension_numbers = #tpu.dot_dimension_numbers<[1], [0], [0], [1], [0, 0, 1, 1], [], []>} : vector<8x8xf32>, vector<8x8xf32>, vector<8x8xf32> -> vector<8x8xf32>
    %c24 = arith.constant 24 : index
    %c0_36 = arith.constant 0 : index
    %92 = vector.load %arg5[%c24, %c0_36] : memref<32x32xf32, #tpu.memory_space<vmem>>, vector<8x32xf32>
    %cst_37 = arith.constant dense<0.000000e+00> : vector<8x32xf32>
    %93 = tpu.matmul %91, %92, %cst_37 {dimension_numbers = #tpu.dot_dimension_numbers<[1], [0], [0], [1], [0, 0, 1, 1], [], []>} : vector<8x8xf32>, vector<8x32xf32>, vector<8x32xf32> -> vector<8x32xf32>
    %94 = arith.addf %75, %93 : vector<8x32xf32>
    %c0_38 = arith.constant 0 : index
    %c0_39 = arith.constant 0 : index
    %95 = vector.load %arg9[%c0_38, %c0_39] : memref<6x32xf32, #tpu.memory_space<vmem>>, vector<1x32xf32>
    %c1 = arith.constant 1 : index
    %c0_40 = arith.constant 0 : index
    %96 = vector.load %arg9[%c1, %c0_40] : memref<6x32xf32, #tpu.memory_space<vmem>>, vector<1x32xf32>
    %c2 = arith.constant 2 : index
    %c0_41 = arith.constant 0 : index
    %97 = vector.load %arg9[%c2, %c0_41] : memref<6x32xf32, #tpu.memory_space<vmem>>, vector<1x32xf32>
    %c3 = arith.constant 3 : index
    %c0_42 = arith.constant 0 : index
    %98 = vector.load %arg9[%c3, %c0_42] : memref<6x32xf32, #tpu.memory_space<vmem>>, vector<1x32xf32>
    %c4 = arith.constant 4 : index
    %c0_43 = arith.constant 0 : index
    %99 = vector.load %arg9[%c4, %c0_43] : memref<6x32xf32, #tpu.memory_space<vmem>>, vector<1x32xf32>
    %c5 = arith.constant 5 : index
    %c0_44 = arith.constant 0 : index
    %100 = vector.load %arg9[%c5, %c0_44] : memref<6x32xf32, #tpu.memory_space<vmem>>, vector<1x32xf32>
    %101 = vector.broadcast %95 : vector<1x32xf32> to vector<8x32xf32>
    %102 = arith.addf %94, %101 : vector<8x32xf32>
    %103 = arith.addf %1, %102 : vector<8x32xf32>
    %cst_45 = arith.constant dense<0.000000e+00> : vector<8xf32>
    %104 = vector.multi_reduction <add>, %103, %cst_45 [1] : vector<8x32xf32> to vector<8xf32>
    %105 = vector.shape_cast %104 : vector<8xf32> to vector<8x1xf32>
    %cst_46 = arith.constant 3.200000e+01 : f32
    %106 = vector.broadcast %cst_46 : f32 to vector<8x1xf32>
    %107 = arith.divf %105, %106 : vector<8x1xf32>
    %108 = vector.broadcast %107 : vector<8x1xf32> to vector<8x32xf32>
    %109 = arith.subf %103, %108 : vector<8x32xf32>
    %110 = arith.mulf %109, %109 : vector<8x32xf32>
    %cst_47 = arith.constant dense<0.000000e+00> : vector<8xf32>
    %111 = vector.multi_reduction <add>, %110, %cst_47 [1] : vector<8x32xf32> to vector<8xf32>
    %112 = vector.shape_cast %111 : vector<8xf32> to vector<8x1xf32>
    %cst_48 = arith.constant 0.0322580636 : f32
    %113 = vector.broadcast %cst_48 : f32 to vector<8x1xf32>
    %114 = arith.mulf %112, %113 : vector<8x1xf32>
    %115 = math.sqrt %114 : vector<8x1xf32>
    %cst_49 = arith.constant 9.99999997E-7 : f32
    %116 = vector.broadcast %cst_49 : f32 to vector<8x1xf32>
    %117 = arith.addf %115, %116 : vector<8x1xf32>
    %118 = vector.broadcast %107 : vector<8x1xf32> to vector<8x32xf32>
    %119 = arith.subf %103, %118 : vector<8x32xf32>
    %120 = vector.broadcast %117 : vector<8x1xf32> to vector<8x32xf32>
    %121 = arith.divf %119, %120 : vector<8x32xf32>
    %122 = vector.broadcast %97 : vector<1x32xf32> to vector<8x32xf32>
    %123 = arith.mulf %122, %121 : vector<8x32xf32>
    %124 = vector.broadcast %98 : vector<1x32xf32> to vector<8x32xf32>
    %125 = arith.addf %123, %124 : vector<8x32xf32>
    %c0_50 = arith.constant 0 : index
    %c0_51 = arith.constant 0 : index
    %126 = vector.load %arg6[%c0_50, %c0_51] : memref<32x64xf32, #tpu.memory_space<vmem>>, vector<32x64xf32>
    %cst_52 = arith.constant dense<0.000000e+00> : vector<8x64xf32>
    %127 = tpu.matmul %125, %126, %cst_52 {dimension_numbers = #tpu.dot_dimension_numbers<[1], [0], [0], [1], [0, 0, 1, 1], [], []>} : vector<8x32xf32>, vector<32x64xf32>, vector<8x64xf32> -> vector<8x64xf32>
    %c0_53 = arith.constant 0 : index
    %c0_54 = arith.constant 0 : index
    %128 = vector.load %arg7[%c0_53, %c0_54] : memref<1x64xf32, #tpu.memory_space<vmem>>, vector<1x64xf32>
    %129 = vector.broadcast %128 : vector<1x64xf32> to vector<8x64xf32>
    %130 = arith.addf %127, %129 : vector<8x64xf32>
    %cst_55 = arith.constant 0.000000e+00 : f32
    %131 = vector.broadcast %cst_55 : f32 to vector<8x64xf32>
    %132 = arith.maximumf %130, %131 : vector<8x64xf32>
    %c0_56 = arith.constant 0 : index
    %c0_57 = arith.constant 0 : index
    %133 = vector.load %arg8[%c0_56, %c0_57] : memref<64x32xf32, #tpu.memory_space<vmem>>, vector<64x32xf32>
    %cst_58 = arith.constant dense<0.000000e+00> : vector<8x32xf32>
    %134 = tpu.matmul %132, %133, %cst_58 {dimension_numbers = #tpu.dot_dimension_numbers<[1], [0], [0], [1], [0, 0, 1, 1], [], []>} : vector<8x64xf32>, vector<64x32xf32>, vector<8x32xf32> -> vector<8x32xf32>
    %135 = vector.broadcast %96 : vector<1x32xf32> to vector<8x32xf32>
    %136 = arith.addf %134, %135 : vector<8x32xf32>
    %137 = arith.addf %125, %136 : vector<8x32xf32>
    %cst_59 = arith.constant dense<0.000000e+00> : vector<8xf32>
    %138 = vector.multi_reduction <add>, %137, %cst_59 [1] : vector<8x32xf32> to vector<8xf32>
    %139 = vector.shape_cast %138 : vector<8xf32> to vector<8x1xf32>
    %cst_60 = arith.constant 3.200000e+01 : f32
    %140 = vector.broadcast %cst_60 : f32 to vector<8x1xf32>
    %141 = arith.divf %139, %140 : vector<8x1xf32>
    %142 = vector.broadcast %141 : vector<8x1xf32> to vector<8x32xf32>
    %143 = arith.subf %137, %142 : vector<8x32xf32>
    %144 = arith.mulf %143, %143 : vector<8x32xf32>
    %cst_61 = arith.constant dense<0.000000e+00> : vector<8xf32>
    %145 = vector.multi_reduction <add>, %144, %cst_61 [1] : vector<8x32xf32> to vector<8xf32>
    %146 = vector.shape_cast %145 : vector<8xf32> to vector<8x1xf32>
    %cst_62 = arith.constant 0.0322580636 : f32
    %147 = vector.broadcast %cst_62 : f32 to vector<8x1xf32>
    %148 = arith.mulf %146, %147 : vector<8x1xf32>
    %149 = math.sqrt %148 : vector<8x1xf32>
    %cst_63 = arith.constant 9.99999997E-7 : f32
    %150 = vector.broadcast %cst_63 : f32 to vector<8x1xf32>
    %151 = arith.addf %149, %150 : vector<8x1xf32>
    %152 = vector.broadcast %141 : vector<8x1xf32> to vector<8x32xf32>
    %153 = arith.subf %137, %152 : vector<8x32xf32>
    %154 = vector.broadcast %151 : vector<8x1xf32> to vector<8x32xf32>
    %155 = arith.divf %153, %154 : vector<8x32xf32>
    %156 = vector.broadcast %99 : vector<1x32xf32> to vector<8x32xf32>
    %157 = arith.mulf %156, %155 : vector<8x32xf32>
    %158 = vector.broadcast %100 : vector<1x32xf32> to vector<8x32xf32>
    %159 = arith.addf %157, %158 : vector<8x32xf32>
    %c0_64 = arith.constant 0 : index
    %c0_65 = arith.constant 0 : index
    %c0_66 = arith.constant 0 : index
    %160 = vector.load %arg10[%c0_64, %c0_65, %c0_66] : memref<1x8x32xf32, #tpu.memory_space<vmem>>, vector<1x8x32xf32>
    %161 = vector.shape_cast %160 : vector<1x8x32xf32> to vector<8x32xf32>
    %162 = vector.shape_cast %159 : vector<8x32xf32> to vector<1x8x32xf32>
    tpu.vector_store %arg10[%c0_64, %c0_65, %c0_66], %162 {strides = array<i32>} : memref<1x8x32xf32, #tpu.memory_space<vmem>>, vector<1x8x32xf32>,
    return
  }
  func.func @transform_0(%arg0: i32) -> (i32, i32, i32) {
    %c0_i32 = arith.constant 0 : i32
    %c0_i32_0 = arith.constant 0 : i32
    %c0_i32_1 = arith.constant 0 : i32
    return %arg0, %c0_i32, %c0_i32_0 : i32, i32, i32
  }
  func.func @transform_1(%arg0: i32) -> (i32, i32, i32) {
    %c0_i32 = arith.constant 0 : i32
    %c0_i32_0 = arith.constant 0 : i32
    %c0_i32_1 = arith.constant 0 : i32
    return %arg0, %c0_i32, %c0_i32_0 : i32, i32, i32
  }
  func.func @transform_2(%arg0: i32) -> (i32, i32) {
    %c0_i32 = arith.constant 0 : i32
    %c0_i32_0 = arith.constant 0 : i32
    %c0_i32_1 = arith.constant 0 : i32
    return %c0_i32, %c0_i32_0 : i32, i32
  }
  func.func @transform_3(%arg0: i32) -> (i32, i32) {
    %c0_i32 = arith.constant 0 : i32
    %c0_i32_0 = arith.constant 0 : i32
    %c0_i32_1 = arith.constant 0 : i32
    return %c0_i32, %c0_i32_0 : i32, i32
  }
  func.func @transform_4(%arg0: i32) -> (i32, i32) {
    %c0_i32 = arith.constant 0 : i32
    %c0_i32_0 = arith.constant 0 : i32
    %c0_i32_1 = arith.constant 0 : i32
    return %c0_i32, %c0_i32_0 : i32, i32
  }
  func.func @transform_5(%arg0: i32) -> (i32, i32) {
    %c0_i32 = arith.constant 0 : i32
    %c0_i32_0 = arith.constant 0 : i32
    %c0_i32_1 = arith.constant 0 : i32
    return %c0_i32, %c0_i32_0 : i32, i32
  }
  func.func @transform_6(%arg0: i32) -> (i32, i32) {
    %c0_i32 = arith.constant 0 : i32
    %c0_i32_0 = arith.constant 0 : i32
    %c0_i32_1 = arith.constant 0 : i32
    return %c0_i32, %c0_i32_0 : i32, i32
  }
  func.func @transform_7(%arg0: i32) -> (i32, i32) {
    %c0_i32 = arith.constant 0 : i32
    %c0_i32_0 = arith.constant 0 : i32
    %c0_i32_1 = arith.constant 0 : i32
    return %c0_i32, %c0_i32_0 : i32, i32
  }
  func.func @transform_8(%arg0: i32) -> (i32, i32) {
    %c0_i32 = arith.constant 0 : i32
    %c0_i32_0 = arith.constant 0 : i32
    %c0_i32_1 = arith.constant 0 : i32
    return %c0_i32, %c0_i32_0 : i32, i32
  }
  func.func @transform_9(%arg0: i32) -> (i32, i32, i32) {
    %c0_i32 = arith.constant 0 : i32
    %c0_i32_0 = arith.constant 0 : i32
    %c0_i32_1 = arith.constant 0 : i32
    return %arg0, %c0_i32, %c0_i32_0 : i32, i32, i32
  }
}

module attributes {stable_mosaic.version = 11 : i64} {
  func.func @encoder_layer_kernel(%arg0: i32, %arg1: memref<1x8x32xf32, #tpu.memory_space<vmem>>, %arg2: memref<1x8x8xi8, #tpu.memory_space<vmem>>, %arg3: memref<32x96xf32, #tpu.memory_space<vmem>>, %arg4: memref<1x96xf32, #tpu.memory_space<vmem>>, %arg5: memref<32x32xf32, #tpu.memory_space<vmem>>, %arg6: memref<32x64xf32, #tpu.memory_space<vmem>>, %arg7: memref<1x64xf32, #tpu.memory_space<vmem>>, %arg8: memref<64x32xf32, #tpu.memory_space<vmem>>, %arg9: memref<6x32xf32, #tpu.memory_space<vmem>>, %arg10: memref<1x8x32xf32, #tpu.memory_space<vmem>>) attributes {dimension_semantics = [#tpu.dimension_semantics<parallel>], iteration_bounds = array<i64: 2>, scalar_prefetch = 0 : i64, scratch_operands = 0 : i64, tpu.core_type = #tpu.core_type<tc>, window_params = [{transform_indices = @transform_0, window_bounds = array<i64: 1, 8, 32>}, {transform_indices = @transform_1, window_bounds = array<i64: 1, 8, 8>}, {pipeline_mode = #tpu.pipeline_mode<synchronous>, transform_indices = @transform_2, window_bounds = array<i64: 32, 96>}, {pipeline_mode = #tpu.pipeline_mode<synchronous>, transform_indices = @transform_3, window_bounds = array<i64: 1, 96>}, {pipeline_mode = #tpu.pipeline_mode<synchronous>, transform_indices = @transform_4, window_bounds = array<i64: 32, 32>}, {pipeline_mode = #tpu.pipeline_mode<synchronous>, transform_indices = @transform_5, window_bounds = array<i64: 32, 64>}, {pipeline_mode = #tpu.pipeline_mode<synchronous>, transform_indices = @transform_6, window_bounds = array<i64: 1, 64>}, {pipeline_mode = #tpu.pipeline_mode<synchronous>, transform_indices = @transform_7, window_bounds = array<i64: 64, 32>}, {pipeline_mode = #tpu.pipeline_mode<synchronous>, transform_indices = @transform_8, window_bounds = array<i64: 6, 32>}, {transform_indices = @transform_9, window_bounds = array<i64: 1, 8, 32>}]} {
    %c0 = arith.constant 0 : index
    %c0_0 = arith.constant 0 : index
    %c0_1 = arith.constant 0 : index
    %0 = vector.load %arg1[%c0, %c0_0, %c0_1] : memref<1x8x32xf32, #tpu.memory_space<vmem>>, vector<1x8x32xf32>
    %1 = vector.shape_cast %0 : vector<1x8x32xf32> to vector<8x32xf32>
    %c0_2 = arith.constant 0 : index
    %c0_3 = arith.constant 0 : index
    %c0_4 = arith.constant 0 : index
    %2 = vector.load %arg2[%c0_2, %c0_3, %c0_4] : memref<1x8x8xi8, #tpu.memory_space<vmem>>, vector<1x8x8xi8>
    %3 = vector.shape_cast %2 : vector<1x8x8xi8> to vector<8x8xi8>
    %4 = arith.sitofp %3 : vector<8x8xi8> to vector<8x8xf32>
    %cst = arith.constant 0.000000e+00 : f32
    %5 = vector.broadcast %cst : f32 to vector<8x8xf32>
    %6 = arith.cmpf oeq, %4, %5 : vector<8x8xf32>
    %cst_5 = arith.constant -1.000000e+09 : f32
    %cst_6 = arith.constant 0.000000e+00 : f32
    %7 = vector.broadcast %cst_5 : f32 to vector<8x8xf32>
    %8 = vector.broadcast %cst_6 : f32 to vector<8x8xf32>
    %9 = arith.select %6, %7, %8 : vector<8x8xi1>, vector<8x8xf32>
    %c0_7 = arith.constant 0 : index
    %c0_8 = arith.constant 0 : index
    %10 = vector.load %arg3[%c0_7, %c0_8] : memref<32x96xf32, #tpu.memory_space<vmem>>, vector<32x96xf32>
    %cst_9 = arith.constant dense<0.000000e+00> : vector<8x96xf32>
    %11 = tpu.matmul %1, %10, %cst_9 {dimension_numbers = #tpu.dot_dimension_numbers<[1], [0], [0], [1], [0, 0, 1, 1], [], []>} : vector<8x32xf32>, vector<32x96xf32>, vector<8x96xf32> -> vector<8x96xf32>
    %c0_10 = arith.constant 0 : index
    %c0_11 = arith.constant 0 : index
    %12 = vector.load %arg4[%c0_10, %c0_11] : memref<1x96xf32, #tpu.memory_space<vmem>>, vector<1x96xf32>
    %13 = vector.broadcast %12 : vector<1x96xf32> to vector<8x96xf32>
    %14 = arith.addf %11, %13 : vector<8x96xf32>
    %15 = vector.extract_strided_slice %14 {offsets = [0, 0], sizes = [8, 32], strides = [1, 1]} : vector<8x96xf32> to vector<8x32xf32>
    %16 = vector.extract_strided_slice %14 {offsets = [0, 32], sizes = [8, 32], strides = [1, 1]} : vector<8x96xf32> to vector<8x32xf32>
    %17 = vector.extract_strided_slice %14 {offsets = [0, 64], sizes = [8, 32], strides = [1, 1]} : vector<8x96xf32> to vector<8x32xf32>
    %cst_12 = arith.constant 0.000000e+00 : f32
    %18 = vector.broadcast %cst_12 : f32 to vector<8x32xf32>
    %19 = vector.extract_strided_slice %15 {offsets = [0, 0], sizes = [8, 8], strides = [1, 1]} : vector<8x32xf32> to vector<8x8xf32>
    %20 = vector.extract_strided_slice %16 {offsets = [0, 0], sizes = [8, 8], strides = [1, 1]} : vector<8x32xf32> to vector<8x8xf32>
    %cst_13 = arith.constant dense<0.000000e+00> : vector<8x8xf32>
    %21 = tpu.matmul %19, %20, %cst_13 {dimension_numbers = #tpu.dot_dimension_numbers<[1], [1], [0], [0], [0, 0, 1, 0], [], []>} : vector<8x8xf32>, vector<8x8xf32>, vector<8x8xf32> -> vector<8x8xf32>
    %22 = arith.addf %21, %9 : vector<8x8xf32>
    %cst_14 = arith.constant dense<0xFF800000> : vector<8xf32>
    %23 = vector.multi_reduction <maximumf>, %22, %cst_14 [1] : vector<8x8xf32> to vector<8xf32>
    %24 = vector.shape_cast %23 : vector<8xf32> to vector<8x1xf32>
    %25 = vector.broadcast %24 : vector<8x1xf32> to vector<8x8xf32>
    %26 = arith.subf %22, %25 : vector<8x8xf32>
    %27 = math.exp %26 : vector<8x8xf32>
    %cst_15 = arith.constant dense<0.000000e+00> : vector<8xf32>
    %28 = vector.multi_reduction <add>, %27, %cst_15 [1] : vector<8x8xf32> to vector<8xf32>
    %29 = vector.shape_cast %28 : vector<8xf32> to vector<8x1xf32>
    %30 = tpu.reciprocal %29 {approx = true} : vector<8x1xf32> -> vector<8x1xf32>
    %31 = vector.broadcast %30 : vector<8x1xf32> to vector<8x8xf32>
    %32 = arith.mulf %27, %31 : vector<8x8xf32>
    %33 = vector.extract_strided_slice %17 {offsets = [0, 0], sizes = [8, 8], strides = [1, 1]} : vector<8x32xf32> to vector<8x8xf32>
    %cst_16 = arith.constant dense<0.000000e+00> : vector<8x8xf32>
    %34 = tpu.matmul %32, %33, %cst_16 {dimension_numbers = #tpu.dot_dimension_numbers<[1], [0], [0], [1], [0, 0, 1, 1], [], []>} : vector<8x8xf32>, vector<8x8xf32>, vector<8x8xf32> -> vector<8x8xf32>
    %c0_17 = arith.constant 0 : index
    %c0_18 = arith.constant 0 : index
    %35 = vector.load %arg5[%c0_17, %c0_18] : memref<32x32xf32, #tpu.memory_space<vmem>>, vector<8x32xf32>
    %cst_19 = arith.constant dense<0.000000e+00> : vector<8x32xf32>
    %36 = tpu.matmul %34, %35, %cst_19 {dimension_numbers = #tpu.dot_dimension_numbers<[1], [0], [0], [1], [0, 0, 1, 1], [], []>} : vector<8x8xf32>, vector<8x32xf32>, vector<8x32xf32> -> vector<8x32xf32>
    %37 = arith.addf %18, %36 : vector<8x32xf32>
    %38 = vector.extract_strided_slice %15 {offsets = [0, 8], sizes = [8, 8], strides = [1, 1]} : vector<8x32xf32> to vector<8x8xf32>
    %39 = vector.extract_strided_slice %16 {offsets = [0, 8], sizes = [8, 8], strides = [1, 1]} : vector<8x32xf32> to vector<8x8xf32>
    %cst_20 = arith.constant dense<0.000000e+00> : vector<8x8xf32>
    %40 = tpu.matmul %38, %39, %cst_20 {dimension_numbers = #tpu.dot_dimension_numbers<[1], [1], [0], [0], [0, 0, 1, 0], [], []>} : vector<8x8xf32>, vector<8x8xf32>, vector<8x8xf32> -> vector<8x8xf32>
    %41 = arith.addf %40, %9 : vector<8x8xf32>
    %cst_21 = arith.constant dense<0xFF800000> : vector<8xf32>
    %42 = vector.multi_reduction <maximumf>, %41, %cst_21 [1] : vector<8x8xf32> to vector<8xf32>
    %43 = vector.shape_cast %42 : vector<8xf32> to vector<8x1xf32>
    %44 = vector.broadcast %43 : vector<8x1xf32> to vector<8x8xf32>
    %45 = arith.subf %41, %44 : vector<8x8xf32>
    %46 = math.exp %45 : vector<8x8xf32>
    %cst_22 = arith.constant dense<0.000000e+00> : vector<8xf32>
    %47 = vector.multi_reduction <add>, %46, %cst_22 [1] : vector<8x8xf32> to vector<8xf32>
    %48 = vector.shape_cast %47 : vector<8xf32> to vector<8x1xf32>
    %49 = tpu.reciprocal %48 {approx = true} : vector<8x1xf32> -> vector<8x1xf32>
    %50 = vector.broadcast %49 : vector<8x1xf32> to vector<8x8xf32>
    %51 = arith.mulf %46, %50 : vector<8x8xf32>
    %52 = vector.extract_strided_slice %17 {offsets = [0, 8], sizes = [8, 8], strides = [1, 1]} : vector<8x32xf32> to vector<8x8xf32>
    %cst_23 = arith.constant dense<0.000000e+00> : vector<8x8xf32>
    %53 = tpu.matmul %51, %52, %cst_23 {dimension_numbers = #tpu.dot_dimension_numbers<[1], [0], [0], [1], [0, 0, 1, 1], [], []>} : vector<8x8xf32>, vector<8x8xf32>, vector<8x8xf32> -> vector<8x8xf32>
    %c8 = arith.constant 8 : index
    %c0_24 = arith.constant 0 : index
    %54 = vector.load %arg5[%c8, %c0_24] : memref<32x32xf32, #tpu.memory_space<vmem>>, vector<8x32xf32>
    %cst_25 = arith.constant dense<0.000000e+00> : vector<8x32xf32>
    %55 = tpu.matmul %53, %54, %cst_25 {dimension_numbers = #tpu.dot_dimension_numbers<[1], [0], [0], [1], [0, 0, 1, 1], [], []>} : vector<8x8xf32>, vector<8x32xf32>, vector<8x32xf32> -> vector<8x32xf32>
    %56 = arith.addf %37, %55 : vector<8x32xf32>
    %57 = vector.extract_strided_slice %15 {offsets = [0, 16], sizes = [8, 8], strides = [1, 1]} : vector<8x32xf32> to vector<8x8xf32>
    %58 = vector.extract_strided_slice %16 {offsets = [0, 16], sizes = [8, 8], strides = [1, 1]} : vector<8x32xf32> to vector<8x8xf32>
    %cst_26 = arith.constant dense<0.000000e+00> : vector<8x8xf32>
    %59 = tpu.matmul %57, %58, %cst_26 {dimension_numbers = #tpu.dot_dimension_numbers<[1], [1], [0], [0], [0, 0, 1, 0], [], []>} : vector<8x8xf32>, vector<8x8xf32>, vector<8x8xf32> -> vector<8x8xf32>
    %60 = arith.addf %59, %9 : vector<8x8xf32>
    %cst_27 = arith.constant dense<0xFF800000> : vector<8xf32>
    %61 = vector.multi_reduction <maximumf>, %60, %cst_27 [1] : vector<8x8xf32> to vector<8xf32>
    %62 = vector.shape_cast %61 : vector<8xf32> to vector<8x1xf32>
    %63 = vector.broadcast %62 : vector<8x1xf32> to vector<8x8xf32>
    %64 = arith.subf %60, %63 : vector<8x8xf32>
    %65 = math.exp %64 : vector<8x8xf32>
    %cst_28 = arith.constant dense<0.000000e+00> : vector<8xf32>
    %66 = vector.multi_reduction <add>, %65, %cst_28 [1] : vector<8x8xf32> to vector<8xf32>
    %67 = vector.shape_cast %66 : vector<8xf32> to vector<8x1xf32>
    %68 = tpu.reciprocal %67 {approx = true} : vector<8x1xf32> -> vector<8x1xf32>
    %69 = vector.broadcast %68 : vector<8x1xf32> to vector<8x8xf32>
    %70 = arith.mulf %65, %69 : vector<8x8xf32>
    %71 = vector.extract_strided_slice %17 {offsets = [0, 16], sizes = [8, 8], strides = [1, 1]} : vector<8x32xf32> to vector<8x8xf32>
    %cst_29 = arith.constant dense<0.000000e+00> : vector<8x8xf32>
    %72 = tpu.matmul %70, %71, %cst_29 {dimension_numbers = #tpu.dot_dimension_numbers<[1], [0], [0], [1], [0, 0, 1, 1], [], []>} : vector<8x8xf32>, vector<8x8xf32>, vector<8x8xf32> -> vector<8x8xf32>
    %c16 = arith.constant 16 : index
    %c0_30 = arith.constant 0 : index
    %73 = vector.load %arg5[%c16, %c0_30] : memref<32x32xf32, #tpu.memory_space<vmem>>, vector<8x32xf32>
    %cst_31 = arith.constant dense<0.000000e+00> : vector<8x32xf32>
    %74 = tpu.matmul %72, %73, %cst_31 {dimension_numbers = #tpu.dot_dimension_numbers<[1], [0], [0], [1], [0, 0, 1, 1], [], []>} : vector<8x8xf32>, vector<8x32xf32>, vector<8x32xf32> -> vector<8x32xf32>
    %75 = arith.addf %56, %74 : vector<8x32xf32>
    %76 = vector.extract_strided_slice %15 {offsets = [0, 24], sizes = [8, 8], strides = [1, 1]} : vector<8x32xf32> to vector<8x8xf32>
    %77 = vector.extract_strided_slice %16 {offsets = [0, 24], sizes = [8, 8], strides = [1, 1]} : vector<8x32xf32> to vector<8x8xf32>
    %cst_32 = arith.constant dense<0.000000e+00> : vector<8x8xf32>
    %78 = tpu.matmul %76, %77, %cst_32 {dimension_numbers = #tpu.dot_dimension_numbers<[1], [1], [0], [0], [0, 0, 1, 0], [], []>} : vector<8x8xf32>, vector<8x8xf32>, vector<8x8xf32> -> vector<8x8xf32>
    %79 = arith.addf %78, %9 : vector<8x8xf32>
    %cst_33 = arith.constant dense<0xFF800000> : vector<8xf32>
    %80 = vector.multi_reduction <maximumf>, %79, %cst_33 [1] : vector<8x8xf32> to vector<8xf32>
    %81 = vector.shape_cast %80 : vector<8xf32> to vector<8x1xf32>
    %82 = vector.broadcast %81 : vector<8x1xf32> to vector<8x8xf32>
    %83 = arith.subf %79, %82 : vector<8x8xf32>
    %84 = math.exp %83 : vector<8x8xf32>
    %cst_34 = arith.constant dense<0.000000e+00> : vector<8xf32>
    %85 = vector.multi_reduction <add>, %84, %cst_34 [1] : vector<8x8xf32> to vector<8xf32>
    %86 = vector.shape_cast %85 : vector<8xf32> to vector<8x1xf32>
    %87 = tpu.reciprocal %86 {approx = true} : vector<8x1xf32> -> vector<8x1xf32>
    %88 = vector.broadcast %87 : vector<8x1xf32> to vector<8x8xf32>
    %89 = arith.mulf %84, %88 : vector<8x8xf32>
    %90 = vector.extract_strided_slice %17 {offsets = [0, 24], sizes = [8, 8], strides = [1, 1]} : vector<8x32xf32> to vector<8x8xf32>
    %cst_35 = arith.constant dense<0.000000e+00> : vector<8x8xf32>
    %91 = tpu.matmul %89, %90, %cst_35 {dimension_numbers = #tpu.dot_dimension_numbers<[1], [0], [0], [1], [0, 0, 1, 1], [], []>} : vector<8x8xf32>, vector<8x8xf32>, vector<8x8xf32> -> vector<8x8xf32>
    %c24 = arith.constant 24 : index
    %c0_36 = arith.constant 0 : index
    %92 = vector.load %arg5[%c24, %c0_36] : memref<32x32xf32, #tpu.memory_space<vmem>>, vector<8x32xf32>
    %cst_37 = arith.constant dense<0.000000e+00> : vector<8x32xf32>
    %93 = tpu.matmul %91, %92, %cst_37 {dimension_numbers = #tpu.dot_dimension_numbers<[1], [0], [0], [1], [0, 0, 1, 1], [], []>} : vector<8x8xf32>, vector<8x32xf32>, vector<8x32xf32> -> vector<8x32xf32>
    %94 = arith.addf %75, %93 : vector<8x32xf32>
    %c0_38 = arith.constant 0 : index
    %c0_39 = arith.constant 0 : index
    %95 = vector.load %arg9[%c0_38, %c0_39] : memref<6x32xf32, #tpu.memory_space<vmem>>, vector<1x32xf32>
    %c1 = arith.constant 1 : index
    %c0_40 = arith.constant 0 : index
    %96 = vector.load %arg9[%c1, %c0_40] : memref<6x32xf32, #tpu.memory_space<vmem>>, vector<1x32xf32>
    %c2 = arith.constant 2 : index
    %c0_41 = arith.constant 0 : index
    %97 = vector.load %arg9[%c2, %c0_41] : memref<6x32xf32, #tpu.memory_space<vmem>>, vector<1x32xf32>
    %c3 = arith.constant 3 : index
    %c0_42 = arith.constant 0 : index
    %98 = vector.load %arg9[%c3, %c0_42] : memref<6x32xf32, #tpu.memory_space<vmem>>, vector<1x32xf32>
    %c4 = arith.constant 4 : index
    %c0_43 = arith.constant 0 : index
    %99 = vector.load %arg9[%c4, %c0_43] : memref<6x32xf32, #tpu.memory_space<vmem>>, vector<1x32xf32>
    %c5 = arith.constant 5 : index
    %c0_44 = arith.constant 0 : index
    %100 = vector.load %arg9[%c5, %c0_44] : memref<6x32xf32, #tpu.memory_space<vmem>>, vector<1x32xf32>
    %101 = vector.broadcast %95 : vector<1x32xf32> to vector<8x32xf32>
    %102 = arith.addf %94, %101 : vector<8x32xf32>
    %103 = arith.addf %1, %102 : vector<8x32xf32>
    %cst_45 = arith.constant dense<0.000000e+00> : vector<8xf32>
    %104 = vector.multi_reduction <add>, %103, %cst_45 [1] : vector<8x32xf32> to vector<8xf32>
    %105 = vector.shape_cast %104 : vector<8xf32> to vector<8x1xf32>
    %cst_46 = arith.constant 3.200000e+01 : f32
    %106 = vector.broadcast %cst_46 : f32 to vector<8x1xf32>
    %107 = arith.divf %105, %106 : vector<8x1xf32>
    %108 = vector.broadcast %107 : vector<8x1xf32> to vector<8x32xf32>
    %109 = arith.subf %103, %108 : vector<8x32xf32>
    %110 = arith.mulf %109, %109 : vector<8x32xf32>
    %cst_47 = arith.constant dense<0.000000e+00> : vector<8xf32>
    %111 = vector.multi_reduction <add>, %110, %cst_47 [1] : vector<8x32xf32> to vector<8xf32>
    %112 = vector.shape_cast %111 : vector<8xf32> to vector<8x1xf32>
    %cst_48 = arith.constant 0.0322580636 : f32
    %113 = vector.broadcast %cst_48 : f32 to vector<8x1xf32>
    %114 = arith.mulf %112, %113 : vector<8x1xf32>
    %115 = math.sqrt %114 : vector<8x1xf32>
    %cst_49 = arith.constant 9.99999997E-7 : f32
    %116 = vector.broadcast %cst_49 : f32 to vector<8x1xf32>
    %117 = arith.addf %115, %116 : vector<8x1xf32>
    %118 = vector.broadcast %107 : vector<8x1xf32> to vector<8x32xf32>
    %119 = arith.subf %103, %118 : vector<8x32xf32>
    %120 = vector.broadcast %117 : vector<8x1xf32> to vector<8x32xf32>
    %121 = arith.divf %119, %120 : vector<8x32xf32>
    %122 = vector.broadcast %97 : vector<1x32xf32> to vector<8x32xf32>
    %123 = arith.mulf %122, %121 : vector<8x32xf32>
    %124 = vector.broadcast %98 : vector<1x32xf32> to vector<8x32xf32>
    %125 = arith.addf %123, %124 : vector<8x32xf32>
    %c0_50 = arith.constant 0 : index
    %c0_51 = arith.constant 0 : index
    %126 = vector.load %arg6[%c0_50, %c0_51] : memref<32x64xf32, #tpu.memory_space<vmem>>, vector<32x64xf32>
    %cst_52 = arith.constant dense<0.000000e+00> : vector<8x64xf32>
    %127 = tpu.matmul %125, %126, %cst_52 {dimension_numbers = #tpu.dot_dimension_numbers<[1], [0], [0], [1], [0, 0, 1, 1], [], []>} : vector<8x32xf32>, vector<32x64xf32>, vector<8x64xf32> -> vector<8x64xf32>
    %c0_53 = arith.constant 0 : index
    %c0_54 = arith.constant 0 : index
    %128 = vector.load %arg7[%c0_53, %c0_54] : memref<1x64xf32, #tpu.memory_space<vmem>>, vector<1x64xf32>
    %129 = vector.broadcast %128 : vector<1x64xf32> to vector<8x64xf32>
    %130 = arith.addf %127, %129 : vector<8x64xf32>
    %cst_55 = arith.constant 0.000000e+00 : f32
    %131 = vector.broadcast %cst_55 : f32 to vector<8x64xf32>
    %132 = arith.maximumf %130, %131 : vector<8x64xf32>
    %c0_56 = arith.constant 0 : index
    %c0_57 = arith.constant 0 : index
    %133 = vector.load %arg8[%c0_56, %c0_57] : memref<64x32xf32, #tpu.memory_space<vmem>>, vector<64x32xf32>
    %cst_58 = arith.constant dense<0.000000e+00> : vector<8x32xf32>
    %134 = tpu.matmul %132, %133, %cst_58 {dimension_numbers = #tpu.dot_dimension_numbers<[1], [0], [0], [1], [0, 0, 1, 1], [], []>} : vector<8x64xf32>, vector<64x32xf32>, vector<8x32xf32> -> vector<8x32xf32>
    %135 = vector.broadcast %96 : vector<1x32xf32> to vector<8x32xf32>
    %136 = arith.addf %134, %135 : vector<8x32xf32>
    %137 = arith.addf %125, %136 : vector<8x32xf32>
    %cst_59 = arith.constant dense<0.000000e+00> : vector<8xf32>
    %138 = vector.multi_reduction <add>, %137, %cst_59 [1] : vector<8x32xf32> to vector<8xf32>
    %139 = vector.shape_cast %138 : vector<8xf32> to vector<8x1xf32>
    %cst_60 = arith.constant 3.200000e+01 : f32
    %140 = vector.broadcast %cst_60 : f32 to vector<8x1xf32>
    %141 = arith.divf %139, %140 : vector<8x1xf32>
    %142 = vector.broadcast %141 : vector<8x1xf32> to vector<8x32xf32>
    %143 = arith.subf %137, %142 : vector<8x32xf32>
    %144 = arith.mulf %143, %143 : vector<8x32xf32>
    %cst_61 = arith.constant dense<0.000000e+00> : vector<8xf32>
    %145 = vector.multi_reduction <add>, %144, %cst_61 [1] : vector<8x32xf32> to vector<8xf32>
    %146 = vector.shape_cast %145 : vector<8xf32> to vector<8x1xf32>
    %cst_62 = arith.constant 0.0322580636 : f32
    %147 = vector.broadcast %cst_62 : f32 to vector<8x1xf32>
    %148 = arith.mulf %146, %147 : vector<8x1xf32>
    %149 = math.sqrt %148 : vector<8x1xf32>
    %cst_63 = arith.constant 9.99999997E-7 : f32
    %150 = vector.broadcast %cst_63 : f32 to vector<8x1xf32>
    %151 = arith.addf %149, %150 : vector<8x1xf32>
    %152 = vector.broadcast %141 : vector<8x1xf32> to vector<8x32xf32>
    %153 = arith.subf %137, %152 : vector<8x32xf32>
    %154 = vector.broadcast %151 : vector<8x1xf32> to vector<8x32xf32>
    %155 = arith.divf %153, %154 : vector<8x32xf32>
    %156 = vector.broadcast %99 : vector<1x32xf32> to vector<8x32xf32>
    %157 = arith.mulf %156, %155 : vector<8x32xf32>
    %158 = vector.broadcast %100 : vector<1x32xf32> to vector<8x32xf32>
    %159 = arith.addf %157, %158 : vector<8x32xf32>
    %c0_64 = arith.constant 0 : index
    %c0_65 = arith.constant 0 : index
    %c0_66 = arith.constant 0 : index
    %160 = vector.load %arg10[%c0_64, %c0_65, %c0_66] : memref<1x8x32xf32, #tpu.memory_space<vmem>>, vector<1x8x32xf32>
    %161 = vector.shape_cast %160 : vector<1x8x32xf32> to vector<8x32xf32>
    %162 = vector.shape_cast %159 : vector<8x32xf32> to vector<1x8x32xf32>
    tpu.vector_store %arg10[%c0_64, %c0_65, %c0_66], %162 {strides = array<i32>} : memref<1x8x32xf32, #tpu.memory_space<vmem>>, vector<1x8x32xf32>,
    return
  }
  func.func @transform_0(%arg0: i32) -> (i32, i32, i32) {
    %c0_i32 = arith.constant 0 : i32
    %c0_i32_0 = arith.constant 0 : i32
    %c0_i32_1 = arith.constant 0 : i32
    return %arg0, %c0_i32, %c0_i32_0 : i32, i32, i32
  }
  func.func @transform_1(%arg0: i32) -> (i32, i32, i32) {
    %c0_i32 = arith.constant 0 : i32
    %c0_i32_0 = arith.constant 0 : i32
    %c0_i32_1 = arith.constant 0 : i32
    return %arg0, %c0_i32, %c0_i32_0 : i32, i32, i32
  }
  func.func @transform_2(%arg0: i32) -> (i32, i32) {
    %c0_i32 = arith.constant 0 : i32
    %c0_i32_0 = arith.constant 0 : i32
    %c0_i32_1 = arith.constant 0 : i32
    return %c0_i32, %c0_i32_0 : i32, i32
  }
  func.func @transform_3(%arg0: i32) -> (i32, i32) {
    %c0_i32 = arith.constant 0 : i32
    %c0_i32_0 = arith.constant 0 : i32
    %c0_i32_1 = arith.constant 0 : i32
    return %c0_i32, %c0_i32_0 : i32, i32
  }
  func.func @transform_4(%arg0: i32) -> (i32, i32) {
    %c0_i32 = arith.constant 0 : i32
    %c0_i32_0 = arith.constant 0 : i32
    %c0_i32_1 = arith.constant 0 : i32
    return %c0_i32, %c0_i32_0 : i32, i32
  }
  func.func @transform_5(%arg0: i32) -> (i32, i32) {
    %c0_i32 = arith.constant 0 : i32
    %c0_i32_0 = arith.constant 0 : i32
    %c0_i32_1 = arith.constant 0 : i32
    return %c0_i32, %c0_i32_0 : i32, i32
  }
  func.func @transform_6(%arg0: i32) -> (i32, i32) {
    %c0_i32 = arith.constant 0 : i32
    %c0_i32_0 = arith.constant 0 : i32
    %c0_i32_1 = arith.constant 0 : i32
    return %c0_i32, %c0_i32_0 : i32, i32
  }
  func.func @transform_7(%arg0: i32) -> (i32, i32) {
    %c0_i32 = arith.constant 0 : i32
    %c0_i32_0 = arith.constant 0 : i32
    %c0_i32_1 = arith.constant 0 : i32
    return %c0_i32, %c0_i32_0 : i32, i32
  }
  func.func @transform_8(%arg0: i32) -> (i32, i32) {
    %c0_i32 = arith.constant 0 : i32
    %c0_i32_0 = arith.constant 0 : i32
    %c0_i32_1 = arith.constant 0 : i32
    return %c0_i32, %c0_i32_0 : i32, i32
  }
  func.func @transform_9(%arg0: i32) -> (i32, i32, i32) {
    %c0_i32 = arith.constant 0 : i32
    %c0_i32_0 = arith.constant 0 : i32
    %c0_i32_1 = arith.constant 0 : i32
    return %arg0, %c0_i32, %c0_i32_0 : i32, i32, i32
  }
}

</mosaic_0001>

<llo_original>
// kernel: tpu_custom_call.1
$region0: #{tpu_custom_call.1}
  #allocation0 [shape = 'u32[]', space=smem, size = 0x4, offset = 0x4, fixed_abs, tag = 'smem constant byte address 0x4 - core index']
  #allocation1 [shape = 'u32[72,128]{1,0:T(1,128)}', space=vmem, size = 0x9000, scoped, tag = 'internal scratch']
  %s0 = inlined_call_operand.hbm [shape: f32[2,8,32], index: 0, kind: input, shape index: {}]
  %s1 = inlined_call_operand.hbm [shape: s8[2,8,8], index: 1, kind: input, shape index: {}]
  %s2 = inlined_call_operand.vmem [shape: f32[32,96], index: 2, kind: input, shape index: {}]
  %s3 = inlined_call_operand.vmem [shape: f32[1,96], index: 3, kind: input, shape index: {}]
  %s4 = inlined_call_operand.vmem [shape: f32[32,32], index: 4, kind: input, shape index: {}]
  %s5 = inlined_call_operand.vmem [shape: f32[32,64], index: 5, kind: input, shape index: {}]
  %s6 = inlined_call_operand.vmem [shape: f32[1,64], index: 6, kind: input, shape index: {}]
  %s7 = inlined_call_operand.vmem [shape: f32[64,32], index: 7, kind: input, shape index: {}]
  %s8 = inlined_call_operand.hbm [shape: f32[6,32], index: 8, kind: input, shape index: {}]
  %s9 = inlined_call_operand.hbm [shape: f32[2,8,32], index: 9, kind: output, shape index: {}]
  %s10 = sld [smem:[#allocation0]]
  $region81: #{tpu_custom_call.1} parent=0
    _
  %s12 = ssub.s32 1, %s10
  %s13 = scalar_select 0, %s12, %s10
  $region1: #{tpu_custom_call.1} parent=0
    #allocation2 [shape = 'u8[8192]{0}', space=vmem, size = 0x2000, scoped, tag = 'input window, operand 0']
    #allocation3 [shape = 's32[2]{0}', space=sflag, size = 0x8, scoped, tag = 'scoped memory for tpu_custom_call.1']
    #allocation4 [shape = 's32[2]{0}', space=sflag, size = 0x8, scoped, tag = 'scoped memory for tpu_custom_call.1']
    #allocation5 [shape = 'u8[2048]{0}', space=vmem, size = 0x800, scoped, tag = 'input window, operand 1']
    #allocation6 [shape = 's32[2]{0}', space=sflag, size = 0x8, scoped, tag = 'scoped memory for tpu_custom_call.1']
    #allocation7 [shape = 'u8[4096]{0}', space=vmem, size = 0x1000, scoped, tag = 'input window, operand 8, single buffered']
    #allocation8 [shape = 'u8[8192]{0}', space=vmem, size = 0x2000, scoped, tag = 'output window, operand 0']
    %14 = vsyncpa [#allocation3], 0
    %s15 = scalar_lea.sflag [#allocation3], 1
    %16 = vsyncpa %s15, 0
    %17 = vsyncpa [#allocation6], 0
    %s18 = scalar_lea.sflag [#allocation6], 1
    %19 = vsyncpa %s18, 0
    %20 = vsyncpa [#allocation4], 0
    %s21 = scalar_lea.sflag [#allocation4], 1
    %22 = vsyncpa %s21, 0
    loop: start=0, step=1, limit=4
    $region2: #{tpu_custom_call.1} parent=1 // loop_pre_header
      _
    $region3: #{tpu_custom_call.1} parent=1 // loop_header
      %s24 = sphi 0, %s28
      %p25 = scmp.ge.s32.totalorder %s24, 4
      %s34 = sphi 0, %s36
      %s37 = sphi 0, %s34
      %s38 = sphi 0, %s37
      %s54 = sphi 0, %s38
      %s60 = sphi 0, %s62
      %s63 = sphi 0, %s60
      %s64 = sphi 0, %s63
      %s80 = sphi 0, %s64
      %s84 = sphi 0, %s84
      %s86 = sphi 0, %s84
      %s87 = sphi 0, %s86
      %s101 = sphi 0, %s87
      %s105 = sphi 0, %s105
      %s107 = sphi 0, %s105
      %s108 = sphi 0, %s107
      %s122 = sphi 0, %s108
      %s126 = sphi 0, %s126
      %s128 = sphi 0, %s126
      %s129 = sphi 0, %s128
      %s143 = sphi 0, %s129
      %s147 = sphi 0, %s147
      %s149 = sphi 0, %s147
      %s150 = sphi 0, %s149
      %s164 = sphi 0, %s150
      %s168 = sphi 0, %s168
      %s170 = sphi 0, %s168
      %s171 = sphi 0, %s170
      %s185 = sphi 0, %s171
      %s189 = sphi 0, %s189
      %s191 = sphi 0, %s189
      %s192 = sphi 0, %s191
      %s206 = sphi 0, %s192
      %s210 = sphi 0, %s210
      %s212 = sphi 0, %s210
      %s213 = sphi 0, %s212
      %s227 = sphi 0, %s213
      %s233 = sphi 0, %s235
      %s236 = sphi 0, %s233
      %s237 = sphi 0, %s236
      %s253 = sphi 0, %s237
    $region4: #{tpu_custom_call.1} parent=1 // loop_header_branch
      %27 = sbr.rel (%p25) target = $region8
    $region5: #{tpu_custom_call.1} parent=1 // loop_body
      %s29 = ssub.s32 %s24, 1
      %s30 = ssub.s32 %s24, 2
      %s31 = sadd.s32 %s24, 1
      %s32 = ssub.s32 %s24, %s31
      %p33 = scmp.eq.s32.totalorder %s32, 0
      %s35 = sadd.s32 %s34, 1
      %s36 = scalar_select %p33, %s34, %s35
      %p39 = pneg %p33
      %p40 = scmp.eq.s32.totalorder %s24, 1
      %p41 = por %p39, %p40
      %p42 = scmp.ne.s32.totalorder %s34, %s37
      %p43 = scmp.eq.s32.totalorder %s24, 0
      %p44 = por %p42, %p43
      %p45 = scmp.ne.s32.totalorder %s34, %s37
      %p46 = scmp.eq.s32.totalorder %s29, 1
      %p47 = por %p45, %p46
      %p48 = scmp.ne.s32.totalorder %s37, %s38
      %p49 = scmp.eq.s32.totalorder %s29, 0
      %p50 = por %p48, %p49
      %p51 = scmp.ne.s32.totalorder %s37, %s38
      %p52 = scmp.eq.s32.totalorder %s30, 1
      %p53 = por %p51, %p52
      %p55 = scmp.ne.s32.totalorder %s38, %s54
      %p56 = scmp.eq.s32.totalorder %s30, 0
      %p57 = por %p55, %p56
      %s58 = ssub.s32 %s24, %s31
      %p59 = scmp.eq.s32.totalorder %s58, 0
      %s61 = sadd.s32 %s60, 1
      %s62 = scalar_select %p59, %s60, %s61
      %p65 = pneg %p59
      %p66 = scmp.eq.s32.totalorder %s24, 1
      %p67 = por %p65, %p66
      %p68 = scmp.ne.s32.totalorder %s60, %s63
      %p69 = scmp.eq.s32.totalorder %s24, 0
      %p70 = por %p68, %p69
      %p71 = scmp.ne.s32.totalorder %s60, %s63
      %p72 = scmp.eq.s32.totalorder %s29, 1
      %p73 = por %p71, %p72
      %p74 = scmp.ne.s32.totalorder %s63, %s64
      %p75 = scmp.eq.s32.totalorder %s29, 0
      %p76 = por %p74, %p75
      %p77 = scmp.ne.s32.totalorder %s63, %s64
      %p78 = scmp.eq.s32.totalorder %s30, 1
      %p79 = por %p77, %p78
      %p81 = scmp.ne.s32.totalorder %s64, %s80
      %p82 = scmp.eq.s32.totalorder %s30, 0
      %p83 = por %p81, %p82
      %s85 = sadd.s32 %s84, 1
      %p88 = scmp.eq.s32.totalorder %s24, 1
      %p89 = scmp.ne.s32.totalorder %s84, %s86
      %p90 = scmp.eq.s32.totalorder %s24, 0
      %p91 = por %p89, %p90
      %p92 = scmp.ne.s32.totalorder %s84, %s86
      %p93 = scmp.eq.s32.totalorder %s29, 1
      %p94 = por %p92, %p93
      %p95 = scmp.ne.s32.totalorder %s86, %s87
      %p96 = scmp.eq.s32.totalorder %s29, 0
      %p97 = por %p95, %p96
      %p98 = scmp.ne.s32.totalorder %s86, %s87
      %p99 = scmp.eq.s32.totalorder %s30, 1
      %p100 = por %p98, %p99
      %p102 = scmp.ne.s32.totalorder %s87, %s101
      %p103 = scmp.eq.s32.totalorder %s30, 0
      %p104 = por %p102, %p103
      %s106 = sadd.s32 %s105, 1
      %p109 = scmp.eq.s32.totalorder %s24, 1
      %p110 = scmp.ne.s32.totalorder %s105, %s107
      %p111 = scmp.eq.s32.totalorder %s24, 0
      %p112 = por %p110, %p111
      %p113 = scmp.ne.s32.totalorder %s105, %s107
      %p114 = scmp.eq.s32.totalorder %s29, 1
      %p115 = por %p113, %p114
      %p116 = scmp.ne.s32.totalorder %s107, %s108
      %p117 = scmp.eq.s32.totalorder %s29, 0
      %p118 = por %p116, %p117
      %p119 = scmp.ne.s32.totalorder %s107, %s108
      %p120 = scmp.eq.s32.totalorder %s30, 1
      %p121 = por %p119, %p120
      %p123 = scmp.ne.s32.totalorder %s108, %s122
      %p124 = scmp.eq.s32.totalorder %s30, 0
      %p125 = por %p123, %p124
      %s127 = sadd.s32 %s126, 1
      %p130 = scmp.eq.s32.totalorder %s24, 1
      %p131 = scmp.ne.s32.totalorder %s126, %s128
      %p132 = scmp.eq.s32.totalorder %s24, 0
      %p133 = por %p131, %p132
      %p134 = scmp.ne.s32.totalorder %s126, %s128
      %p135 = scmp.eq.s32.totalorder %s29, 1
      %p136 = por %p134, %p135
      %p137 = scmp.ne.s32.totalorder %s128, %s129
      %p138 = scmp.eq.s32.totalorder %s29, 0
      %p139 = por %p137, %p138
      %p140 = scmp.ne.s32.totalorder %s128, %s129
      %p141 = scmp.eq.s32.totalorder %s30, 1
      %p142 = por %p140, %p141
      %p144 = scmp.ne.s32.totalorder %s129, %s143
      %p145 = scmp.eq.s32.totalorder %s30, 0
      %p146 = por %p144, %p145
      %s148 = sadd.s32 %s147, 1
      %p151 = scmp.eq.s32.totalorder %s24, 1
      %p152 = scmp.ne.s32.totalorder %s147, %s149
      %p153 = scmp.eq.s32.totalorder %s24, 0
      %p154 = por %p152, %p153
      %p155 = scmp.ne.s32.totalorder %s147, %s149
      %p156 = scmp.eq.s32.totalorder %s29, 1
      %p157 = por %p155, %p156
      %p158 = scmp.ne.s32.totalorder %s149, %s150
      %p159 = scmp.eq.s32.totalorder %s29, 0
      %p160 = por %p158, %p159
      %p161 = scmp.ne.s32.totalorder %s149, %s150
      %p162 = scmp.eq.s32.totalorder %s30, 1
      %p163 = por %p161, %p162
      %p165 = scmp.ne.s32.totalorder %s150, %s164
      %p166 = scmp.eq.s32.totalorder %s30, 0
      %p167 = por %p165, %p166
      %s169 = sadd.s32 %s168, 1
      %p172 = scmp.eq.s32.totalorder %s24, 1
      %p173 = scmp.ne.s32.totalorder %s168, %s170
      %p174 = scmp.eq.s32.totalorder %s24, 0
      %p175 = por %p173, %p174
      %p176 = scmp.ne.s32.totalorder %s168, %s170
      %p177 = scmp.eq.s32.totalorder %s29, 1
      %p178 = por %p176, %p177
      %p179 = scmp.ne.s32.totalorder %s170, %s171
      %p180 = scmp.eq.s32.totalorder %s29, 0
      %p181 = por %p179, %p180
      %p182 = scmp.ne.s32.totalorder %s170, %s171
      %p183 = scmp.eq.s32.totalorder %s30, 1
      %p184 = por %p182, %p183
      %p186 = scmp.ne.s32.totalorder %s171, %s185
      %p187 = scmp.eq.s32.totalorder %s30, 0
      %p188 = por %p186, %p187
      %s190 = sadd.s32 %s189, 1
      %p193 = scmp.eq.s32.totalorder %s24, 1
      %p194 = scmp.ne.s32.totalorder %s189, %s191
      %p195 = scmp.eq.s32.totalorder %s24, 0
      %p196 = por %p194, %p195
      %p197 = scmp.ne.s32.totalorder %s189, %s191
      %p198 = scmp.eq.s32.totalorder %s29, 1
      %p199 = por %p197, %p198
      %p200 = scmp.ne.s32.totalorder %s191, %s192
      %p201 = scmp.eq.s32.totalorder %s29, 0
      %p202 = por %p200, %p201
      %p203 = scmp.ne.s32.totalorder %s191, %s192
      %p204 = scmp.eq.s32.totalorder %s30, 1
      %p205 = por %p203, %p204
      %p207 = scmp.ne.s32.totalorder %s192, %s206
      %p208 = scmp.eq.s32.totalorder %s30, 0
      %p209 = por %p207, %p208
      %s211 = sadd.s32 %s210, 1
      %p214 = scmp.eq.s32.totalorder %s24, 1
      %p215 = scmp.ne.s32.totalorder %s210, %s212
      %p216 = scmp.eq.s32.totalorder %s24, 0
      %p217 = por %p215, %p216
      %p218 = scmp.ne.s32.totalorder %s210, %s212
      %p219 = scmp.eq.s32.totalorder %s29, 1
      %p220 = por %p218, %p219
      %p221 = scmp.ne.s32.totalorder %s212, %s213
      %p222 = scmp.eq.s32.totalorder %s29, 0
      %p223 = por %p221, %p222
      %p224 = scmp.ne.s32.totalorder %s212, %s213
      %p225 = scmp.eq.s32.totalorder %s30, 1
      %p226 = por %p224, %p225
      %p228 = scmp.ne.s32.totalorder %s213, %s227
      %p229 = scmp.eq.s32.totalorder %s30, 0
      %p230 = por %p228, %p229
      %s231 = ssub.s32 %s24, %s31
      %p232 = scmp.eq.s32.totalorder %s231, 0
      %s234 = sadd.s32 %s233, 1
      %s235 = scalar_select %p232, %s233, %s234
      %p238 = pneg %p232
      %p239 = scmp.eq.s32.totalorder %s24, 1
      %p240 = por %p238, %p239
      %p241 = scmp.ne.s32.totalorder %s233, %s236
      %p242 = scmp.eq.s32.totalorder %s24, 0
      %p243 = por %p241, %p242
      %p244 = scmp.ne.s32.totalorder %s233, %s236
      %p245 = scmp.eq.s32.totalorder %s29, 1
      %p246 = por %p244, %p245
      %p247 = scmp.ne.s32.totalorder %s236, %s237
      %p248 = scmp.eq.s32.totalorder %s29, 0
      %p249 = por %p247, %p248
      %p250 = scmp.ne.s32.totalorder %s236, %s237
      %p251 = scmp.eq.s32.totalorder %s30, 1
      %p252 = por %p250, %p251
      %p254 = scmp.ne.s32.totalorder %s237, %s253
      %p255 = scmp.eq.s32.totalorder %s30, 0
      %p256 = por %p254, %p255
      %p257 = scmp.le.s32.totalorder 1, %s24
      %p258 = scmp.lt.s32.totalorder %s24, 3
      %p259 = pnand %p257, %p258
      %p260 = pneg %p259
      // Predicated region
      $region9: #{tpu_custom_call.1} parent=5 // pred_check
        _
      $region10: #{tpu_custom_call.1} parent=5 // pred_check_branch
        %262 = sbr.rel (%p259) target = $region12
      $region11: #{tpu_custom_call.1} parent=5 // pred_region
        %s263 = ssub.s32 %s24, 1
        // Predicated region
        $region13: #{tpu_custom_call.1} parent=11 // pred_check
          %p264 = pneg %p97
        $region14: #{tpu_custom_call.1} parent=11 // pred_check_branch
          %266 = sbr.rel (%p264) target = $region16
        $region15: #{tpu_custom_call.1} parent=11 // pred_region
          _
        $region16: #{tpu_custom_call.1} parent=11 // pred_fallthru
          _
        // Predicated region
        $region17: #{tpu_custom_call.1} parent=11 // pred_check
          %p267 = pneg %p118
        $region18: #{tpu_custom_call.1} parent=11 // pred_check_branch
          %269 = sbr.rel (%p267) target = $region20
        $region19: #{tpu_custom_call.1} parent=11 // pred_region
          _
        $region20: #{tpu_custom_call.1} parent=11 // pred_fallthru
          _
        // Predicated region
        $region21: #{tpu_custom_call.1} parent=11 // pred_check
          %p270 = pneg %p139
        $region22: #{tpu_custom_call.1} parent=11 // pred_check_branch
          %272 = sbr.rel (%p270) target = $region24
        $region23: #{tpu_custom_call.1} parent=11 // pred_region
          _
        $region24: #{tpu_custom_call.1} parent=11 // pred_fallthru
          _
        // Predicated region
        $region25: #{tpu_custom_call.1} parent=11 // pred_check
          %p273 = pneg %p160
        $region26: #{tpu_custom_call.1} parent=11 // pred_check_branch
          %275 = sbr.rel (%p273) target = $region28
        $region27: #{tpu_custom_call.1} parent=11 // pred_region
          _
        $region28: #{tpu_custom_call.1} parent=11 // pred_fallthru
          _
        // Predicated region
        $region29: #{tpu_custom_call.1} parent=11 // pred_check
          %p276 = pneg %p181
        $region30: #{tpu_custom_call.1} parent=11 // pred_check_branch
          %278 = sbr.rel (%p276) target = $region32
        $region31: #{tpu_custom_call.1} parent=11 // pred_region
          _
        $region32: #{tpu_custom_call.1} parent=11 // pred_fallthru
          _
        // Predicated region
        $region33: #{tpu_custom_call.1} parent=11 // pred_check
          %p279 = pneg %p202
        $region34: #{tpu_custom_call.1} parent=11 // pred_check_branch
          %281 = sbr.rel (%p279) target = $region36
        $region35: #{tpu_custom_call.1} parent=11 // pred_region
          _
        $region36: #{tpu_custom_call.1} parent=11 // pred_fallthru
          _
        // Predicated region
        $region37: #{tpu_custom_call.1} parent=11 // pred_check
          %p282 = pneg %p223
        $region38: #{tpu_custom_call.1} parent=11 // pred_check_branch
          %284 = sbr.rel (%p282) target = $region40
        $region39: #{tpu_custom_call.1} parent=11 // pred_region
          %286 = vsyncadd [#allocation6], 0
          %s288 = sshll.u32 %s8, 4
          %s289 = int_to_ptr.hbm [resolvable:$true] %s288
          %s290 = sshll.u32 [#allocation7], 4
          %s291 = int_to_ptr.vmem [resolvable:$true] %s290
          %293 = dma.hbm_to_vmem [thread:$0]  %s289, 128, %s291, [#allocation6]
        $region40: #{tpu_custom_call.1} parent=11 // pred_fallthru
          _
      $region12: #{tpu_custom_call.1} parent=5 // pred_fallthru
        _
      %p294 = scmp.lt.s32.totalorder %s24, 2
      // Predicated region
      $region41: #{tpu_custom_call.1} parent=5 // pred_check
        %p295 = pneg %p294
      $region42: #{tpu_custom_call.1} parent=5 // pred_check_branch
        %297 = sbr.rel (%p295) target = $region44
      $region43: #{tpu_custom_call.1} parent=5 // pred_region
        // Predicated region
        $region45: #{tpu_custom_call.1} parent=43 // pred_check
          %p298 = pneg %p44
        $region46: #{tpu_custom_call.1} parent=43 // pred_check_branch
          %300 = sbr.rel (%p298) target = $region48
        $region47: #{tpu_custom_call.1} parent=43 // pred_region
          %s301 = sand.u32 %s34, 1
          %s302 = scalar_lea.sflag [#allocation3], %s301
          %s303 = sand.u32 %s34, 1
          %s304 = smul.addr %s303, 8
          %s305 = scalar_lea.vmem [#allocation2], %s304
          %307 = vsyncadd %s302, 0
          %s308 = smul.addr %s24, 8
          %s309 = scalar_lea.hbm %s0, %s308
          %s311 = sshll.u32 %s309, 4
          %s312 = int_to_ptr.hbm [resolvable:$true] %s311
          %s313 = sshll.u32 %s305, 4
          %s314 = int_to_ptr.vmem [resolvable:$true] %s313
          %316 = dma.hbm_to_vmem [thread:$0]  %s312, 128, %s314, %s302
        $region48: #{tpu_custom_call.1} parent=43 // pred_fallthru
          _
        // Predicated region
        $region49: #{tpu_custom_call.1} parent=43 // pred_check
          %p317 = pneg %p70
        $region50: #{tpu_custom_call.1} parent=43 // pred_check_branch
          %319 = sbr.rel (%p317) target = $region52
        $region51: #{tpu_custom_call.1} parent=43 // pred_region
          %s320 = sand.u32 %s24, 1
          %s321 = scalar_lea.sflag [#allocation6], %s320
          %s322 = sand.u32 %s60, 1
          %s323 = smul.addr %s322, 2
          %s324 = scalar_lea.vmem [#allocation5], %s323
          %326 = vsyncadd %s321, 0
          %s327 = smul.addr %s24, 2
          %s328 = scalar_lea.hbm %s1, %s327
          %s330 = sshll.u32 %s328, 4
          %s331 = int_to_ptr.hbm [resolvable:$true] %s330
          %s332 = sshll.u32 %s324, 4
          %s333 = int_to_ptr.vmem [resolvable:$true] %s332
          %335 = dma.hbm_to_vmem [thread:$0]  %s331, 32, %s333, %s321
        $region52: #{tpu_custom_call.1} parent=43 // pred_fallthru
          _
      $region44: #{tpu_custom_call.1} parent=5 // pred_fallthru
        _
      %p336 = scmp.le.s32.totalorder 1, %s24
      %p337 = scmp.lt.s32.totalorder %s24, 3
      %p338 = pnand %p336, %p337
      %p339 = pneg %p338
      // Predicated region
      $region53: #{tpu_custom_call.1} parent=5 // pred_check
        _
      $region54: #{tpu_custom_call.1} parent=5 // pred_check_branch
        %341 = sbr.rel (%p338) target = $region56
      $region55: #{tpu_custom_call.1} parent=5 // pred_region
        %s342 = ssub.s32 %s24, 1
        %s343 = sand.u32 %s37, 1
        %s344 = scalar_lea.sflag [#allocation3], %s343
        %s345 = sand.u32 %s37, 1
        %s346 = smul.addr %s345, 8
        %s347 = scalar_lea.vmem [#allocation2], %s346
        // Predicated region
        $region57: #{tpu_custom_call.1} parent=55 // pred_check
          %p348 = pneg %p50
        $region58: #{tpu_custom_call.1} parent=55 // pred_check_branch
          %350 = sbr.rel (%p348) target = $region60
        $region59: #{tpu_custom_call.1} parent=55 // pred_region
          %352 = dma.done %s344, 128
        $region60: #{tpu_custom_call.1} parent=55 // pred_fallthru
          _
        %s353 = sand.u32 %s29, 1
        %s354 = scalar_lea.sflag [#allocation6], %s353
        %s355 = sand.u32 %s63, 1
        %s356 = smul.addr %s355, 2
        %s357 = scalar_lea.vmem [#allocation5], %s356
        // Predicated region
        $region61: #{tpu_custom_call.1} parent=55 // pred_check
          %p358 = pneg %p76
        $region62: #{tpu_custom_call.1} parent=55 // pred_check_branch
          %360 = sbr.rel (%p358) target = $region64
        $region63: #{tpu_custom_call.1} parent=55 // pred_region
          %362 = dma.done %s354, 32
        $region64: #{tpu_custom_call.1} parent=55 // pred_fallthru
          _
        // Predicated region
        $region65: #{tpu_custom_call.1} parent=55 // pred_check
          %p363 = pneg %p223
        $region66: #{tpu_custom_call.1} parent=55 // pred_check_branch
          %365 = sbr.rel (%p363) target = $region68
        $region67: #{tpu_custom_call.1} parent=55 // pred_region
          %367 = dma.done [#allocation6], 128
        $region68: #{tpu_custom_call.1} parent=55 // pred_fallthru
          _
        %s368 = sand.u32 %s37, 1
        %s369 = scalar_lea.sflag [#allocation3], %s368
        %s370 = sand.u32 %s37, 1
        %s371 = smul.addr %s370, 8
        %s372 = scalar_lea.vmem [#allocation2], %s371
        %p373 = pneg %p50
        %p374 = pneg %p47
        %s375 = sand.u32 %s29, 1
        %s376 = scalar_lea.sflag [#allocation6], %s375
        %s377 = sand.u32 %s63, 1
        %s378 = smul.addr %s377, 2
        %s379 = scalar_lea.vmem [#allocation5], %s378
        %p380 = pneg %p76
        %p381 = pneg %p73
        %p382 = pneg %p97
        %p383 = pneg %p94
        %p384 = pneg %p118
        %p385 = pneg %p115
        %p386 = pneg %p139
        %p387 = pneg %p136
        %p388 = pneg %p160
        %p389 = pneg %p157
        %p390 = pneg %p181
        %p391 = pneg %p178
        %p392 = pneg %p202
        %p393 = pneg %p199
        %p394 = pneg %p223
        %p395 = pneg %p220
        %p396 = pneg %p249
        %p397 = pneg %p246
        %s398 = sand.u32 %s236, 1
        %s399 = scalar_lea.sflag [#allocation4], %s398
        %s400 = sand.u32 %s236, 1
        %s401 = smul.addr %s400, 8
        %s402 = scalar_lea.vmem [#allocation8], %s401
        %v403 = vld [vmem:[%s347] sm:$0xff]
        %v404 = vld [vmem:[%s357] sm:$0x3]
        %v405 = vunpack.c.0.s8 %v404
        %v406 = vcvt.s32.f32 %v405
        %vm407 = vcmp.eq.f32.partialorder %v406, 0.0
        %v408 = vsel %vm407, -1e+09, 0.0
        %v409 = vld [vmem:[%s2] sm:$0xff]
        %v410 = vld [vmem:[%s2 + $0x8] sm:$0xff]
        %v411 = vld [vmem:[%s2 + $0x10] sm:$0xff]
        %v412 = vld [vmem:[%s2 + $0x18] sm:$0xff]
        %v413 = vld [vmem:[%s3] sm:$0x1]
        %v415 = vperm.slane %v413, 0
        %vm417 = vcmask 261120
        %v419 = vsel %vm417, %v403, 0
        %421 = vmatpush.msra.mxu0 0.0
        %422 = vmatpush.msra.mxu0 0.0
        %423 = vmatpush.msra.mxu0 0.0
        %424 = vmatpush.msra.mxu0 0.0
        %425 = vmatpush.msra.mxu0 0.0
        %426 = vmatpush.msra.mxu0 0.0
        %427 = vmatpush.msra.mxu0 0.0
        %428 = vmatpush.msra.mxu0 0.0
        %429 = vmatpush.msra.mxu0 0.0
        %430 = vmatpush.msra.mxu0 0.0
        %431 = vmatpush.msra.mxu0 0.0
        %432 = vmatpush.msra.mxu0 0.0
        %433 = vmatpush.msra.mxu0 %v412
        %434 = vmatpush.msra.mxu0 %v411
        %435 = vmatpush.msra.mxu0 %v410
        %436 = vmatpush.msra.mxu0 %v409
        %437 = vmatmul.f32.gmra.mxu0 %v419
        %v438 = vpop.f32.mrf.mxu0
        %v439 = vadd.f32 %v415, %v438
        %440 = vdwg.mxu0
        %442 = vrot.lane.b32.xlu0 %v439, 96
        %v443 = vpop.permute.xlu0 %442
        %vm444 = vcmask 64512
        %v445 = vsel %vm444, %v439, 0
        %v447 = vsel %vm444, %v443, 0
        %449 = vmatpush.xpose.msra.mxu0 0.0
        %450 = vmatpush.xpose.msra.mxu0 0.0
        %451 = vmatpush.xpose.msra.mxu0 0.0
        %452 = vmatpush.xpose.msra.mxu0 0.0
        %453 = vmatpush.xpose.msra.mxu0 0.0
        %454 = vmatpush.xpose.msra.mxu0 0.0
        %455 = vmatpush.xpose.msra.mxu0 0.0
        %456 = vmatpush.xpose.msra.mxu0 0.0
        %457 = vmatpush.xpose.msra.mxu0 0.0
        %458 = vmatpush.xpose.msra.mxu0 0.0
        %459 = vmatpush.xpose.msra.mxu0 0.0
        %460 = vmatpush.xpose.msra.mxu0 0.0
        %461 = vmatpush.xpose.msra.mxu0 0.0
        %462 = vmatpush.xpose.msra.mxu0 0.0
        %463 = vmatpush.xpose.msra.mxu0 0.0
        %464 = vmatpush.xpose.msra.mxu0 %v447
        %465 = vmatmul.f32.gmra.mxu0 %v445
        %v466 = vpop.f32.mrf.mxu0
        %v467 = vadd.f32 %v408, %v466
        %468 = vdwg.mxu0
        %v469 = vsel %vm444, %v467, -inf
        %470 = vmax.xlane.f32.xlu0 %v469
        %v471 = vpop.xlane.xlu0 %470
        %v472 = vsub.f32 %v467, %v471
        %v473 = vmul.f32 %v472, 1.442695
        %v474 = vpow.pop %v473
        %v475 = vsel %vm444, %v474, 0.0
        %476 = vadd.xlane.f32.xlu0 %v475
        %v477 = vpop.xlane.xlu0 %476
        %v478 = vrcp.pop %v477
        %v479 = vmul.f32 %v474, %v478
        %480 = vrot.lane.b32.xlu0 %v439, 64
        %v481 = vpop.permute.xlu0 %480
        %v484 = vsel %vm444, %v479, 0
        %486 = vmatpush.msra.mxu0 0.0
        %487 = vmatpush.msra.mxu0 0.0
        %488 = vmatpush.msra.mxu0 0.0
        %489 = vmatpush.msra.mxu0 0.0
        %490 = vmatpush.msra.mxu0 0.0
        %491 = vmatpush.msra.mxu0 0.0
        %492 = vmatpush.msra.mxu0 0.0
        %493 = vmatpush.msra.mxu0 0.0
        %494 = vmatpush.msra.mxu0 0.0
        %495 = vmatpush.msra.mxu0 0.0
        %496 = vmatpush.msra.mxu0 0.0
        %497 = vmatpush.msra.mxu0 0.0
        %498 = vmatpush.msra.mxu0 0.0
        %499 = vmatpush.msra.mxu0 0.0
        %500 = vmatpush.msra.mxu0 0.0
        %501 = vmatpush.msra.mxu0 %v481
        %502 = vmatmul.f32.gmra.mxu0 %v484
        %v503 = vpop.f32.mrf.mxu0
        %v504 = vadd.f32 0.0, %v503
        %505 = vdwg.mxu0
        %v506 = vld [vmem:[%s4] sm:$0xff]
        %507 = vrot.lane.b32.xlu0 %v439, 120
        %v508 = vpop.permute.xlu0 %507
        %509 = vrot.lane.b32.xlu0 %v439, 88
        %v510 = vpop.permute.xlu0 %509
        %v511 = vsel %vm444, %v508, 0
        %v513 = vsel %vm444, %v510, 0
        %515 = vmatpush.xpose.msra.mxu0 0.0
        %516 = vmatpush.xpose.msra.mxu0 0.0
        %517 = vmatpush.xpose.msra.mxu0 0.0
        %518 = vmatpush.xpose.msra.mxu0 0.0
        %519 = vmatpush.xpose.msra.mxu0 0.0
        %520 = vmatpush.xpose.msra.mxu0 0.0
        %521 = vmatpush.xpose.msra.mxu0 0.0
        %522 = vmatpush.xpose.msra.mxu0 0.0
        %523 = vmatpush.xpose.msra.mxu0 0.0
        %524 = vmatpush.xpose.msra.mxu0 0.0
        %525 = vmatpush.xpose.msra.mxu0 0.0
        %526 = vmatpush.xpose.msra.mxu0 0.0
        %527 = vmatpush.xpose.msra.mxu0 0.0
        %528 = vmatpush.xpose.msra.mxu0 0.0
        %529 = vmatpush.xpose.msra.mxu0 0.0
        %530 = vmatpush.xpose.msra.mxu0 %v513
        %531 = vmatmul.f32.gmra.mxu0 %v511
        %v532 = vpop.f32.mrf.mxu0
        %v533 = vadd.f32 %v408, %v532
        %534 = vdwg.mxu0
        %v535 = vsel %vm444, %v533, -inf
        %536 = vmax.xlane.f32.xlu0 %v535
        %v537 = vpop.xlane.xlu0 %536
        %v538 = vsub.f32 %v533, %v537
        %v539 = vmul.f32 %v538, 1.442695
        %v540 = vpow.pop %v539
        %v541 = vsel %vm444, %v540, 0.0
        %542 = vadd.xlane.f32.xlu0 %v541
        %v543 = vpop.xlane.xlu0 %542
        %v544 = vrcp.pop %v543
        %v545 = vmul.f32 %v540, %v544
        %546 = vrot.lane.b32.xlu0 %v439, 56
        %v547 = vpop.permute.xlu0 %546
        %v550 = vsel %vm444, %v545, 0
        %552 = vmatpush.msra.mxu0 0.0
        %553 = vmatpush.msra.mxu0 0.0
        %554 = vmatpush.msra.mxu0 0.0
        %555 = vmatpush.msra.mxu0 0.0
        %556 = vmatpush.msra.mxu0 0.0
        %557 = vmatpush.msra.mxu0 0.0
        %558 = vmatpush.msra.mxu0 0.0
        %559 = vmatpush.msra.mxu0 0.0
        %560 = vmatpush.msra.mxu0 0.0
        %561 = vmatpush.msra.mxu0 0.0
        %562 = vmatpush.msra.mxu0 0.0
        %563 = vmatpush.msra.mxu0 0.0
        %564 = vmatpush.msra.mxu0 0.0
        %565 = vmatpush.msra.mxu0 0.0
        %566 = vmatpush.msra.mxu0 0.0
        %567 = vmatpush.msra.mxu0 %v547
        %568 = vmatmul.f32.gmra.mxu0 %v550
        %v569 = vpop.f32.mrf.mxu0
        %v570 = vadd.f32 0.0, %v569
        %571 = vdwg.mxu0
        %v572 = vld [vmem:[%s4 + $0x8] sm:$0xff]
        %v574 = vsel %vm444, %v570, 0
        %576 = vmatpush.msra.mxu0 0.0
        %577 = vmatpush.msra.mxu0 0.0
        %578 = vmatpush.msra.mxu0 0.0
        %579 = vmatpush.msra.mxu0 0.0
        %580 = vmatpush.msra.mxu0 0.0
        %581 = vmatpush.msra.mxu0 0.0
        %582 = vmatpush.msra.mxu0 0.0
        %583 = vmatpush.msra.mxu0 0.0
        %584 = vmatpush.msra.mxu0 0.0
        %585 = vmatpush.msra.mxu0 0.0
        %586 = vmatpush.msra.mxu0 0.0
        %587 = vmatpush.msra.mxu0 0.0
        %588 = vmatpush.msra.mxu0 0.0
        %589 = vmatpush.msra.mxu0 0.0
        %590 = vmatpush.msra.mxu0 0.0
        %591 = vmatpush.msra.mxu0 %v572
        %592 = vmatmul.f32.gmra.mxu0 %v574
        %v593 = vpop.f32.mrf.mxu0
        %v594 = vadd.f32 0.0, %v593
        %595 = vdwg.mxu0
        %v597 = vsel %vm444, %v504, 0
        %599 = vmatpush.msra.mxu0 0.0
        %600 = vmatpush.msra.mxu0 0.0
        %601 = vmatpush.msra.mxu0 0.0
        %602 = vmatpush.msra.mxu0 0.0
        %603 = vmatpush.msra.mxu0 0.0
        %604 = vmatpush.msra.mxu0 0.0
        %605 = vmatpush.msra.mxu0 0.0
        %606 = vmatpush.msra.mxu0 0.0
        %607 = vmatpush.msra.mxu0 0.0
        %608 = vmatpush.msra.mxu0 0.0
        %609 = vmatpush.msra.mxu0 0.0
        %610 = vmatpush.msra.mxu0 0.0
        %611 = vmatpush.msra.mxu0 0.0
        %612 = vmatpush.msra.mxu0 0.0
        %613 = vmatpush.msra.mxu0 0.0
        %614 = vmatpush.msra.mxu0 %v506
        %615 = vmatmul.f32.gmra.mxu0 %v597
        %v616 = vpop.f32.mrf.mxu0
        %v617 = vadd.f32 %v594, %v616
        %618 = vdwg.mxu0
        %619 = vrot.lane.b32.xlu0 %v439, 112
        %v620 = vpop.permute.xlu0 %619
        %621 = vrot.lane.b32.xlu0 %v439, 80
        %v622 = vpop.permute.xlu0 %621
        %v623 = vsel %vm444, %v620, 0
        %v625 = vsel %vm444, %v622, 0
        %627 = vmatpush.xpose.msra.mxu0 0.0
        %628 = vmatpush.xpose.msra.mxu0 0.0
        %629 = vmatpush.xpose.msra.mxu0 0.0
        %630 = vmatpush.xpose.msra.mxu0 0.0
        %631 = vmatpush.xpose.msra.mxu0 0.0
        %632 = vmatpush.xpose.msra.mxu0 0.0
        %633 = vmatpush.xpose.msra.mxu0 0.0
        %634 = vmatpush.xpose.msra.mxu0 0.0
        %635 = vmatpush.xpose.msra.mxu0 0.0
        %636 = vmatpush.xpose.msra.mxu0 0.0
        %637 = vmatpush.xpose.msra.mxu0 0.0
        %638 = vmatpush.xpose.msra.mxu0 0.0
        %639 = vmatpush.xpose.msra.mxu0 0.0
        %640 = vmatpush.xpose.msra.mxu0 0.0
        %641 = vmatpush.xpose.msra.mxu0 0.0
        %642 = vmatpush.xpose.msra.mxu0 %v625
        %643 = vmatmul.f32.gmra.mxu0 %v623
        %v644 = vpop.f32.mrf.mxu0
        %v645 = vadd.f32 %v408, %v644
        %646 = vdwg.mxu0
        %v647 = vsel %vm444, %v645, -inf
        %648 = vmax.xlane.f32.xlu0 %v647
        %v649 = vpop.xlane.xlu0 %648
        %v650 = vsub.f32 %v645, %v649
        %v651 = vmul.f32 %v650, 1.442695
        %v652 = vpow.pop %v651
        %v653 = vsel %vm444, %v652, 0.0
        %654 = vadd.xlane.f32.xlu0 %v653
        %v655 = vpop.xlane.xlu0 %654
        %v656 = vrcp.pop %v655
        %v657 = vmul.f32 %v652, %v656
        %658 = vrot.lane.b32.xlu0 %v439, 48
        %v659 = vpop.permute.xlu0 %658
        %v662 = vsel %vm444, %v657, 0
        %664 = vmatpush.msra.mxu0 0.0
        %665 = vmatpush.msra.mxu0 0.0
        %666 = vmatpush.msra.mxu0 0.0
        %667 = vmatpush.msra.mxu0 0.0
        %668 = vmatpush.msra.mxu0 0.0
        %669 = vmatpush.msra.mxu0 0.0
        %670 = vmatpush.msra.mxu0 0.0
        %671 = vmatpush.msra.mxu0 0.0
        %672 = vmatpush.msra.mxu0 0.0
        %673 = vmatpush.msra.mxu0 0.0
        %674 = vmatpush.msra.mxu0 0.0
        %675 = vmatpush.msra.mxu0 0.0
        %676 = vmatpush.msra.mxu0 0.0
        %677 = vmatpush.msra.mxu0 0.0
        %678 = vmatpush.msra.mxu0 0.0
        %679 = vmatpush.msra.mxu0 %v659
        %680 = vmatmul.f32.gmra.mxu0 %v662
        %v681 = vpop.f32.mrf.mxu0
        %v682 = vadd.f32 0.0, %v681
        %683 = vdwg.mxu0
        %v684 = vld [vmem:[%s4 + $0x10] sm:$0xff]
        %v686 = vsel %vm444, %v682, 0
        %688 = vmatpush.msra.mxu0 0.0
        %689 = vmatpush.msra.mxu0 0.0
        %690 = vmatpush.msra.mxu0 0.0
        %691 = vmatpush.msra.mxu0 0.0
        %692 = vmatpush.msra.mxu0 0.0
        %693 = vmatpush.msra.mxu0 0.0
        %694 = vmatpush.msra.mxu0 0.0
        %695 = vmatpush.msra.mxu0 0.0
        %696 = vmatpush.msra.mxu0 0.0
        %697 = vmatpush.msra.mxu0 0.0
        %698 = vmatpush.msra.mxu0 0.0
        %699 = vmatpush.msra.mxu0 0.0
        %700 = vmatpush.msra.mxu0 0.0
        %701 = vmatpush.msra.mxu0 0.0
        %702 = vmatpush.msra.mxu0 0.0
        %703 = vmatpush.msra.mxu0 %v684
        %704 = vmatmul.f32.gmra.mxu0 %v686
        %v705 = vpop.f32.mrf.mxu0
        %v706 = vadd.f32 0.0, %v705
        %707 = vdwg.mxu0
        %v708 = vadd.f32 %v617, %v706
        %709 = vrot.lane.b32.xlu0 %v439, 104
        %v710 = vpop.permute.xlu0 %709
        %711 = vrot.lane.b32.xlu0 %v439, 72
        %v712 = vpop.permute.xlu0 %711
        %v713 = vsel %vm444, %v710, 0
        %v715 = vsel %vm444, %v712, 0
        %717 = vmatpush.xpose.msra.mxu0 0.0
        %718 = vmatpush.xpose.msra.mxu0 0.0
        %719 = vmatpush.xpose.msra.mxu0 0.0
        %720 = vmatpush.xpose.msra.mxu0 0.0
        %721 = vmatpush.xpose.msra.mxu0 0.0
        %722 = vmatpush.xpose.msra.mxu0 0.0
        %723 = vmatpush.xpose.msra.mxu0 0.0
        %724 = vmatpush.xpose.msra.mxu0 0.0
        %725 = vmatpush.xpose.msra.mxu0 0.0
        %726 = vmatpush.xpose.msra.mxu0 0.0
        %727 = vmatpush.xpose.msra.mxu0 0.0
        %728 = vmatpush.xpose.msra.mxu0 0.0
        %729 = vmatpush.xpose.msra.mxu0 0.0
        %730 = vmatpush.xpose.msra.mxu0 0.0
        %731 = vmatpush.xpose.msra.mxu0 0.0
        %732 = vmatpush.xpose.msra.mxu0 %v715
        %733 = vmatmul.f32.gmra.mxu0 %v713
        %v734 = vpop.f32.mrf.mxu0
        %v735 = vadd.f32 %v408, %v734
        %736 = vdwg.mxu0
        %v737 = vsel %vm444, %v735, -inf
        %738 = vmax.xlane.f32.xlu0 %v737
        %v739 = vpop.xlane.xlu0 %738
        %v740 = vsub.f32 %v735, %v739
        %v741 = vmul.f32 %v740, 1.442695
        %v742 = vpow.pop %v741
        %v743 = vsel %vm444, %v742, 0.0
        %744 = vadd.xlane.f32.xlu0 %v743
        %v745 = vpop.xlane.xlu0 %744
        %v746 = vrcp.pop %v745
        %v747 = vmul.f32 %v742, %v746
        %748 = vrot.lane.b32.xlu0 %v439, 40
        %v749 = vpop.permute.xlu0 %748
        %v752 = vsel %vm444, %v747, 0
        %754 = vmatpush.msra.mxu0 0.0
        %755 = vmatpush.msra.mxu0 0.0
        %756 = vmatpush.msra.mxu0 0.0
        %757 = vmatpush.msra.mxu0 0.0
        %758 = vmatpush.msra.mxu0 0.0
        %759 = vmatpush.msra.mxu0 0.0
        %760 = vmatpush.msra.mxu0 0.0
        %761 = vmatpush.msra.mxu0 0.0
        %762 = vmatpush.msra.mxu0 0.0
        %763 = vmatpush.msra.mxu0 0.0
        %764 = vmatpush.msra.mxu0 0.0
        %765 = vmatpush.msra.mxu0 0.0
        %766 = vmatpush.msra.mxu0 0.0
        %767 = vmatpush.msra.mxu0 0.0
        %768 = vmatpush.msra.mxu0 0.0
        %769 = vmatpush.msra.mxu0 %v749
        %770 = vmatmul.f32.gmra.mxu0 %v752
        %v771 = vpop.f32.mrf.mxu0
        %v772 = vadd.f32 0.0, %v771
        %773 = vdwg.mxu0
        %v774 = vld [vmem:[%s4 + $0x18] sm:$0xff]
        %v776 = vsel %vm444, %v772, 0
        %778 = vmatpush.msra.mxu0 0.0
        %779 = vmatpush.msra.mxu0 0.0
        %780 = vmatpush.msra.mxu0 0.0
        %781 = vmatpush.msra.mxu0 0.0
        %782 = vmatpush.msra.mxu0 0.0
        %783 = vmatpush.msra.mxu0 0.0
        %784 = vmatpush.msra.mxu0 0.0
        %785 = vmatpush.msra.mxu0 0.0
        %786 = vmatpush.msra.mxu0 0.0
        %787 = vmatpush.msra.mxu0 0.0
        %788 = vmatpush.msra.mxu0 0.0
        %789 = vmatpush.msra.mxu0 0.0
        %790 = vmatpush.msra.mxu0 0.0
        %791 = vmatpush.msra.mxu0 0.0
        %792 = vmatpush.msra.mxu0 0.0
        %793 = vmatpush.msra.mxu0 %v774
        %794 = vmatmul.f32.gmra.mxu0 %v776
        %v795 = vpop.f32.mrf.mxu0
        %v796 = vadd.f32 0.0, %v795
        %797 = vdwg.mxu0
        %v798 = vadd.f32 %v708, %v796
        %v799 = vld [vmem:[#allocation7] sm:$0x1]
        %v800 = vld [vmem:[#allocation7 + $0x1] sm:$0x1]
        %v801 = vld [vmem:[#allocation7 + $0x2] sm:$0x1]
        %v802 = vld [vmem:[#allocation7 + $0x3] sm:$0x1]
        %v803 = vld [vmem:[#allocation7 + $0x4] sm:$0x1]
        %v804 = vld [vmem:[#allocation7 + $0x5] sm:$0x1]
        %v805 = vperm.slane %v799, 0
        %v806 = vadd.f32 %v798, %v805
        %v807 = vadd.f32 %v403, %v806
        %v808 = vsel %vm417, %v807, 0.0
        %809 = vadd.xlane.f32.xlu0 %v808
        %v810 = vpop.xlane.xlu0 %809
        %v811 = vrcp.pop 32.0
        %v812 = vmul.f32 32.0, %v811
        %v813 = vsub.f32 1.0, %v812
        %v814 = vmul.f32 %v811, %v813
        %v815 = vadd.f32 %v811, %v814
        %vm816 = vweird.f32 %v811
        %v817 = vsel %vm816, %v811, %v815
        %v818 = vmul.f32 %v810, %v817
        %v819 = vsub.f32 %v807, %v818
        %v820 = vmul.f32 %v819, %v819
        %v821 = vsel %vm417, %v820, 0.0
        %822 = vadd.xlane.f32.xlu0 %v821
        %v823 = vpop.xlane.xlu0 %822
        %v824 = vmul.f32 %v823, 0.032258064
        %v825 = vrsqrt.pop %v824
        %v826 = vmul.f32 %v825, %v824
        %v827 = vmul.f32 %v826, %v825
        %v828 = vmul.f32 0.5, %v827
        %v829 = vsub.f32 1.5, %v828
        %v830 = vmul.f32 %v825, %v829
        %v831 = vmul.f32 %v824, %v830
        %vm832 = vcmp.eq.f32.partialorder %v824, inf
        %v833 = vsel %vm832, %v824, %v831
        %vm834 = vcmp.eq.f32.partialorder %v824, 0.0
        %v835 = vand.u32 %v824, 2147483648
        %v836 = vsel %vm834, %v835, %v833
        %v837 = vadd.f32 %v836, 1e-06
        %v838 = vrcp.pop %v837
        %v839 = vmul.f32 %v837, %v838
        %v840 = vsub.f32 1.0, %v839
        %v841 = vmul.f32 %v838, %v840
        %v842 = vadd.f32 %v838, %v841
        %vm843 = vweird.f32 %v837
        %vm844 = vweird.f32 %v838
        %vm845 = vmor %vm843, %vm844
        %v846 = vsel %vm845, %v838, %v842
        %v847 = vand.u32 2147483647, %v837
        %vm848 = vcmp.eq.f32.partialorder %v847, 8.507059e+37
        %v849 = vand.u32 %v837, 2147483648
        %v850 = vor.u32 1.1754944e-38, %v849
        %v851 = vsel %vm848, %v850, %v846
        %v852 = vmul.f32 %v819, %v851
        %v853 = vperm.slane %v801, 0
        %v854 = vmul.f32 %v853, %v852
        %v855 = vperm.slane %v802, 0
        %v856 = vadd.f32 %v854, %v855
        %v857 = vld [vmem:[%s5] sm:$0xff]
        %v858 = vld [vmem:[%s5 + $0x8] sm:$0xff]
        %v859 = vld [vmem:[%s5 + $0x10] sm:$0xff]
        %v860 = vld [vmem:[%s5 + $0x18] sm:$0xff]
        %v861 = vld [vmem:[%s6] sm:$0x1]
        %v863 = vperm.slane %v861, 0
        %v866 = vsel %vm417, %v856, 0
        %868 = vmatpush.msra.mxu0 0.0
        %869 = vmatpush.msra.mxu0 0.0
        %870 = vmatpush.msra.mxu0 0.0
        %871 = vmatpush.msra.mxu0 0.0
        %872 = vmatpush.msra.mxu0 0.0
        %873 = vmatpush.msra.mxu0 0.0
        %874 = vmatpush.msra.mxu0 0.0
        %875 = vmatpush.msra.mxu0 0.0
        %876 = vmatpush.msra.mxu0 0.0
        %877 = vmatpush.msra.mxu0 0.0
        %878 = vmatpush.msra.mxu0 0.0
        %879 = vmatpush.msra.mxu0 0.0
        %880 = vmatpush.msra.mxu0 %v860
        %881 = vmatpush.msra.mxu0 %v859
        %882 = vmatpush.msra.mxu0 %v858
        %883 = vmatpush.msra.mxu0 %v857
        %884 = vmatmul.f32.gmra.mxu0 %v866
        %v885 = vpop.f32.mrf.mxu0
        %v886 = vadd.f32 %v863, %v885
        %887 = vdwg.mxu0
        %v888 = vmax.f32 %v886, 0.0
        %v889 = vld [vmem:[%s7] sm:$0xff]
        %v890 = vld [vmem:[%s7 + $0x8] sm:$0xff]
        %v891 = vld [vmem:[%s7 + $0x10] sm:$0xff]
        %v892 = vld [vmem:[%s7 + $0x18] sm:$0xff]
        %v893 = vld [vmem:[%s7 + $0x20] sm:$0xff]
        %v894 = vld [vmem:[%s7 + $0x28] sm:$0xff]
        %v895 = vld [vmem:[%s7 + $0x30] sm:$0xff]
        %v896 = vld [vmem:[%s7 + $0x38] sm:$0xff]
        %v897 = vperm.slane %v800, 0
        %vm898 = vcmask 523264
        %v900 = vsel %vm898, %v888, 0
        %902 = vmatpush.msra.mxu0 0.0
        %903 = vmatpush.msra.mxu0 0.0
        %904 = vmatpush.msra.mxu0 0.0
        %905 = vmatpush.msra.mxu0 0.0
        %906 = vmatpush.msra.mxu0 0.0
        %907 = vmatpush.msra.mxu0 0.0
        %908 = vmatpush.msra.mxu0 0.0
        %909 = vmatpush.msra.mxu0 0.0
        %910 = vmatpush.msra.mxu0 %v896
        %911 = vmatpush.msra.mxu0 %v895
        %912 = vmatpush.msra.mxu0 %v894
        %913 = vmatpush.msra.mxu0 %v893
        %914 = vmatpush.msra.mxu0 %v892
        %915 = vmatpush.msra.mxu0 %v891
        %916 = vmatpush.msra.mxu0 %v890
        %917 = vmatpush.msra.mxu0 %v889
        %918 = vmatmul.f32.gmra.mxu0 %v900
        %v919 = vpop.f32.mrf.mxu0
        %v920 = vadd.f32 %v897, %v919
        %921 = vdwg.mxu0
        %v922 = vadd.f32 %v856, %v920
        %v923 = vsel %vm417, %v922, 0.0
        %924 = vadd.xlane.f32.xlu0 %v923
        %v925 = vpop.xlane.xlu0 %924
        %v926 = vmul.f32 %v925, %v817
        %v927 = vsub.f32 %v922, %v926
        %v928 = vmul.f32 %v927, %v927
        %v929 = vsel %vm417, %v928, 0.0
        %930 = vadd.xlane.f32.xlu0 %v929
        %v931 = vpop.xlane.xlu0 %930
        %v932 = vmul.f32 %v931, 0.032258064
        %v933 = vrsqrt.pop %v932
        %v934 = vmul.f32 %v933, %v932
        %v935 = vmul.f32 %v934, %v933
        %v936 = vmul.f32 0.5, %v935
        %v937 = vsub.f32 1.5, %v936
        %v938 = vmul.f32 %v933, %v937
        %v939 = vmul.f32 %v932, %v938
        %vm940 = vcmp.eq.f32.partialorder %v932, inf
        %v941 = vsel %vm940, %v932, %v939
        %vm942 = vcmp.eq.f32.partialorder %v932, 0.0
        %v943 = vand.u32 %v932, 2147483648
        %v944 = vsel %vm942, %v943, %v941
        %v945 = vadd.f32 %v944, 1e-06
        %v946 = vrcp.pop %v945
        %v947 = vmul.f32 %v945, %v946
        %v948 = vsub.f32 1.0, %v947
        %v949 = vmul.f32 %v946, %v948
        %v950 = vadd.f32 %v946, %v949
        %vm951 = vweird.f32 %v945
        %vm952 = vweird.f32 %v946
        %vm953 = vmor %vm951, %vm952
        %v954 = vsel %vm953, %v946, %v950
        %v955 = vand.u32 2147483647, %v945
        %vm956 = vcmp.eq.f32.partialorder %v955, 8.507059e+37
        %v957 = vand.u32 %v945, 2147483648
        %v958 = vor.u32 1.1754944e-38, %v957
        %v959 = vsel %vm956, %v958, %v954
        %v960 = vmul.f32 %v927, %v959
        %v961 = vperm.slane %v803, 0
        %v962 = vmul.f32 %v961, %v960
        %v963 = vperm.slane %v804, 0
        %v964 = vadd.f32 %v962, %v963
        %965 = vst.msk [vmem:[%s402] sm:$0xff] %vm417, %v964
        %s966 = sand.u32 %s236, 1
        %s967 = scalar_lea.sflag [#allocation4], %s966
        %s968 = sand.u32 %s236, 1
        %s969 = smul.addr %s968, 8
        %s970 = scalar_lea.vmem [#allocation8], %s969
        // Predicated region
        $region69: #{tpu_custom_call.1} parent=55 // pred_check
          %p971 = pneg %p246
        $region70: #{tpu_custom_call.1} parent=55 // pred_check_branch
          %973 = sbr.rel (%p971) target = $region72
        $region71: #{tpu_custom_call.1} parent=55 // pred_region
          %975 = vsyncadd %s967, 0
          %s976 = smul.addr %s29, 8
          %s977 = scalar_lea.hbm %s9, %s976
          %s979 = sshll.u32 %s970, 4
          %s980 = int_to_ptr.vmem [resolvable:$true] %s979
          %s981 = sshll.u32 %s977, 4
          %s982 = int_to_ptr.hbm [resolvable:$true] %s981
          %984 = dma.vmem_to_hbm [thread:$0]  %s980, 128, %s982, %s967
        $region72: #{tpu_custom_call.1} parent=55 // pred_fallthru
          _
      $region56: #{tpu_custom_call.1} parent=5 // pred_fallthru
        _
      %p985 = scmp.le.s32.totalorder 2, %s24
      // Predicated region
      $region73: #{tpu_custom_call.1} parent=5 // pred_check
        %p986 = pneg %p985
      $region74: #{tpu_custom_call.1} parent=5 // pred_check_branch
        %988 = sbr.rel (%p986) target = $region76
      $region75: #{tpu_custom_call.1} parent=5 // pred_region
        %s989 = ssub.s32 %s24, 2
        // Predicated region
        $region77: #{tpu_custom_call.1} parent=75 // pred_check
          %p990 = pneg %p252
        $region78: #{tpu_custom_call.1} parent=75 // pred_check_branch
          %992 = sbr.rel (%p990) target = $region80
        $region79: #{tpu_custom_call.1} parent=75 // pred_region
          %s993 = sand.u32 %s237, 1
          %s994 = scalar_lea.sflag [#allocation4], %s993
          %s995 = sand.u32 %s237, 1
          %s996 = smul.addr %s995, 8
          %s997 = scalar_lea.vmem [#allocation8], %s996
          %999 = dma.done %s994, 128
        $region80: #{tpu_custom_call.1} parent=75 // pred_fallthru
          _
      $region76: #{tpu_custom_call.1} parent=5 // pred_fallthru
        _
    $region6: #{tpu_custom_call.1} parent=1 // loop_footer
      %s28 = sadd.s32 1, %s24
    $region7: #{tpu_custom_call.1} parent=1 // loop_footer_branch
      %23 = sbr.rel target = $region3
    $region8: #{tpu_custom_call.1} parent=1 // loop_exit
      _
    %1000 = vsyncpa [#allocation3], 1
    %s1001 = scalar_lea.sflag [#allocation3], 1
    %1002 = vsyncpa %s1001, 1
    %1003 = vsyncpa [#allocation6], 1
    %s1004 = scalar_lea.sflag [#allocation6], 1
    %1005 = vsyncpa %s1004, 1
    %1006 = vsyncpa [#allocation4], 1
    %s1007 = scalar_lea.sflag [#allocation4], 1
    %1008 = vsyncpa %s1007, 1

// kernel: tpu_custom_call.1
$region0: #{tpu_custom_call.1}
  #allocation0 [shape = 'u32[]', space=smem, size = 0x4, offset = 0x4, fixed_abs, tag = 'smem constant byte address 0x4 - core index']
  #allocation1 [shape = 'u32[72,128]{1,0:T(1,128)}', space=vmem, size = 0x9000, scoped, tag = 'internal scratch']
  %s0 = inlined_call_operand.hbm [shape: f32[2,8,32], index: 0, kind: input, shape index: {}]
  %s1 = inlined_call_operand.hbm [shape: s8[2,8,8], index: 1, kind: input, shape index: {}]
  %s2 = inlined_call_operand.vmem [shape: f32[32,96], index: 2, kind: input, shape index: {}]
  %s3 = inlined_call_operand.vmem [shape: f32[1,96], index: 3, kind: input, shape index: {}]
  %s4 = inlined_call_operand.vmem [shape: f32[32,32], index: 4, kind: input, shape index: {}]
  %s5 = inlined_call_operand.vmem [shape: f32[32,64], index: 5, kind: input, shape index: {}]
  %s6 = inlined_call_operand.vmem [shape: f32[1,64], index: 6, kind: input, shape index: {}]
  %s7 = inlined_call_operand.vmem [shape: f32[64,32], index: 7, kind: input, shape index: {}]
  %s8 = inlined_call_operand.hbm [shape: f32[6,32], index: 8, kind: input, shape index: {}]
  %s9 = inlined_call_operand.hbm [shape: f32[2,8,32], index: 9, kind: output, shape index: {}]
  %s10 = sld [smem:[#allocation0]]
  $region81: #{tpu_custom_call.1} parent=0
    _
  %s12 = ssub.s32 1, %s10
  %s13 = scalar_select 0, %s12, %s10
  $region1: #{tpu_custom_call.1} parent=0
    #allocation2 [shape = 'u8[8192]{0}', space=vmem, size = 0x2000, scoped, tag = 'input window, operand 0']
    #allocation3 [shape = 's32[2]{0}', space=sflag, size = 0x8, scoped, tag = 'scoped memory for tpu_custom_call.1']
    #allocation4 [shape = 's32[2]{0}', space=sflag, size = 0x8, scoped, tag = 'scoped memory for tpu_custom_call.1']
    #allocation5 [shape = 'u8[2048]{0}', space=vmem, size = 0x800, scoped, tag = 'input window, operand 1']
    #allocation6 [shape = 's32[2]{0}', space=sflag, size = 0x8, scoped, tag = 'scoped memory for tpu_custom_call.1']
    #allocation7 [shape = 'u8[4096]{0}', space=vmem, size = 0x1000, scoped, tag = 'input window, operand 8, single buffered']
    #allocation8 [shape = 'u8[8192]{0}', space=vmem, size = 0x2000, scoped, tag = 'output window, operand 0']
    %14 = vsyncpa [#allocation3], 0
    %s15 = scalar_lea.sflag [#allocation3], 1
    %16 = vsyncpa %s15, 0
    %17 = vsyncpa [#allocation6], 0
    %s18 = scalar_lea.sflag [#allocation6], 1
    %19 = vsyncpa %s18, 0
    %20 = vsyncpa [#allocation4], 0
    %s21 = scalar_lea.sflag [#allocation4], 1
    %22 = vsyncpa %s21, 0
    loop: start=0, step=1, limit=4
    $region2: #{tpu_custom_call.1} parent=1 // loop_pre_header
      _
    $region3: #{tpu_custom_call.1} parent=1 // loop_header
      %s24 = sphi 0, %s28
      %p25 = scmp.ge.s32.totalorder %s24, 4
      %s34 = sphi 0, %s36
      %s37 = sphi 0, %s34
      %s38 = sphi 0, %s37
      %s54 = sphi 0, %s38
      %s60 = sphi 0, %s62
      %s63 = sphi 0, %s60
      %s64 = sphi 0, %s63
      %s80 = sphi 0, %s64
      %s84 = sphi 0, %s84
      %s86 = sphi 0, %s84
      %s87 = sphi 0, %s86
      %s101 = sphi 0, %s87
      %s105 = sphi 0, %s105
      %s107 = sphi 0, %s105
      %s108 = sphi 0, %s107
      %s122 = sphi 0, %s108
      %s126 = sphi 0, %s126
      %s128 = sphi 0, %s126
      %s129 = sphi 0, %s128
      %s143 = sphi 0, %s129
      %s147 = sphi 0, %s147
      %s149 = sphi 0, %s147
      %s150 = sphi 0, %s149
      %s164 = sphi 0, %s150
      %s168 = sphi 0, %s168
      %s170 = sphi 0, %s168
      %s171 = sphi 0, %s170
      %s185 = sphi 0, %s171
      %s189 = sphi 0, %s189
      %s191 = sphi 0, %s189
      %s192 = sphi 0, %s191
      %s206 = sphi 0, %s192
      %s210 = sphi 0, %s210
      %s212 = sphi 0, %s210
      %s213 = sphi 0, %s212
      %s227 = sphi 0, %s213
      %s233 = sphi 0, %s235
      %s236 = sphi 0, %s233
      %s237 = sphi 0, %s236
      %s253 = sphi 0, %s237
    $region4: #{tpu_custom_call.1} parent=1 // loop_header_branch
      %27 = sbr.rel (%p25) target = $region8
    $region5: #{tpu_custom_call.1} parent=1 // loop_body
      %s29 = ssub.s32 %s24, 1
      %s30 = ssub.s32 %s24, 2
      %s31 = sadd.s32 %s24, 1
      %s32 = ssub.s32 %s24, %s31
      %p33 = scmp.eq.s32.totalorder %s32, 0
      %s35 = sadd.s32 %s34, 1
      %s36 = scalar_select %p33, %s34, %s35
      %p39 = pneg %p33
      %p40 = scmp.eq.s32.totalorder %s24, 1
      %p41 = por %p39, %p40
      %p42 = scmp.ne.s32.totalorder %s34, %s37
      %p43 = scmp.eq.s32.totalorder %s24, 0
      %p44 = por %p42, %p43
      %p45 = scmp.ne.s32.totalorder %s34, %s37
      %p46 = scmp.eq.s32.totalorder %s29, 1
      %p47 = por %p45, %p46
      %p48 = scmp.ne.s32.totalorder %s37, %s38
      %p49 = scmp.eq.s32.totalorder %s29, 0
      %p50 = por %p48, %p49
      %p51 = scmp.ne.s32.totalorder %s37, %s38
      %p52 = scmp.eq.s32.totalorder %s30, 1
      %p53 = por %p51, %p52
      %p55 = scmp.ne.s32.totalorder %s38, %s54
      %p56 = scmp.eq.s32.totalorder %s30, 0
      %p57 = por %p55, %p56
      %s58 = ssub.s32 %s24, %s31
      %p59 = scmp.eq.s32.totalorder %s58, 0
      %s61 = sadd.s32 %s60, 1
      %s62 = scalar_select %p59, %s60, %s61
      %p65 = pneg %p59
      %p66 = scmp.eq.s32.totalorder %s24, 1
      %p67 = por %p65, %p66
      %p68 = scmp.ne.s32.totalorder %s60, %s63
      %p69 = scmp.eq.s32.totalorder %s24, 0
      %p70 = por %p68, %p69
      %p71 = scmp.ne.s32.totalorder %s60, %s63
      %p72 = scmp.eq.s32.totalorder %s29, 1
      %p73 = por %p71, %p72
      %p74 = scmp.ne.s32.totalorder %s63, %s64
      %p75 = scmp.eq.s32.totalorder %s29, 0
      %p76 = por %p74, %p75
      %p77 = scmp.ne.s32.totalorder %s63, %s64
      %p78 = scmp.eq.s32.totalorder %s30, 1
      %p79 = por %p77, %p78
      %p81 = scmp.ne.s32.totalorder %s64, %s80
      %p82 = scmp.eq.s32.totalorder %s30, 0
      %p83 = por %p81, %p82
      %s85 = sadd.s32 %s84, 1
      %p88 = scmp.eq.s32.totalorder %s24, 1
      %p89 = scmp.ne.s32.totalorder %s84, %s86
      %p90 = scmp.eq.s32.totalorder %s24, 0
      %p91 = por %p89, %p90
      %p92 = scmp.ne.s32.totalorder %s84, %s86
      %p93 = scmp.eq.s32.totalorder %s29, 1
      %p94 = por %p92, %p93
      %p95 = scmp.ne.s32.totalorder %s86, %s87
      %p96 = scmp.eq.s32.totalorder %s29, 0
      %p97 = por %p95, %p96
      %p98 = scmp.ne.s32.totalorder %s86, %s87
      %p99 = scmp.eq.s32.totalorder %s30, 1
      %p100 = por %p98, %p99
      %p102 = scmp.ne.s32.totalorder %s87, %s101
      %p103 = scmp.eq.s32.totalorder %s30, 0
      %p104 = por %p102, %p103
      %s106 = sadd.s32 %s105, 1
      %p109 = scmp.eq.s32.totalorder %s24, 1
      %p110 = scmp.ne.s32.totalorder %s105, %s107
      %p111 = scmp.eq.s32.totalorder %s24, 0
      %p112 = por %p110, %p111
      %p113 = scmp.ne.s32.totalorder %s105, %s107
      %p114 = scmp.eq.s32.totalorder %s29, 1
      %p115 = por %p113, %p114
      %p116 = scmp.ne.s32.totalorder %s107, %s108
      %p117 = scmp.eq.s32.totalorder %s29, 0
      %p118 = por %p116, %p117
      %p119 = scmp.ne.s32.totalorder %s107, %s108
      %p120 = scmp.eq.s32.totalorder %s30, 1
      %p121 = por %p119, %p120
      %p123 = scmp.ne.s32.totalorder %s108, %s122
      %p124 = scmp.eq.s32.totalorder %s30, 0
      %p125 = por %p123, %p124
      %s127 = sadd.s32 %s126, 1
      %p130 = scmp.eq.s32.totalorder %s24, 1
      %p131 = scmp.ne.s32.totalorder %s126, %s128
      %p132 = scmp.eq.s32.totalorder %s24, 0
      %p133 = por %p131, %p132
      %p134 = scmp.ne.s32.totalorder %s126, %s128
      %p135 = scmp.eq.s32.totalorder %s29, 1
      %p136 = por %p134, %p135
      %p137 = scmp.ne.s32.totalorder %s128, %s129
      %p138 = scmp.eq.s32.totalorder %s29, 0
      %p139 = por %p137, %p138
      %p140 = scmp.ne.s32.totalorder %s128, %s129
      %p141 = scmp.eq.s32.totalorder %s30, 1
      %p142 = por %p140, %p141
      %p144 = scmp.ne.s32.totalorder %s129, %s143
      %p145 = scmp.eq.s32.totalorder %s30, 0
      %p146 = por %p144, %p145
      %s148 = sadd.s32 %s147, 1
      %p151 = scmp.eq.s32.totalorder %s24, 1
      %p152 = scmp.ne.s32.totalorder %s147, %s149
      %p153 = scmp.eq.s32.totalorder %s24, 0
      %p154 = por %p152, %p153
      %p155 = scmp.ne.s32.totalorder %s147, %s149
      %p156 = scmp.eq.s32.totalorder %s29, 1
      %p157 = por %p155, %p156
      %p158 = scmp.ne.s32.totalorder %s149, %s150
      %p159 = scmp.eq.s32.totalorder %s29, 0
      %p160 = por %p158, %p159
      %p161 = scmp.ne.s32.totalorder %s149, %s150
      %p162 = scmp.eq.s32.totalorder %s30, 1
      %p163 = por %p161, %p162
      %p165 = scmp.ne.s32.totalorder %s150, %s164
      %p166 = scmp.eq.s32.totalorder %s30, 0
      %p167 = por %p165, %p166
      %s169 = sadd.s32 %s168, 1
      %p172 = scmp.eq.s32.totalorder %s24, 1
      %p173 = scmp.ne.s32.totalorder %s168, %s170
      %p174 = scmp.eq.s32.totalorder %s24, 0
      %p175 = por %p173, %p174
      %p176 = scmp.ne.s32.totalorder %s168, %s170
      %p177 = scmp.eq.s32.totalorder %s29, 1
      %p178 = por %p176, %p177
      %p179 = scmp.ne.s32.totalorder %s170, %s171
      %p180 = scmp.eq.s32.totalorder %s29, 0
      %p181 = por %p179, %p180
      %p182 = scmp.ne.s32.totalorder %s170, %s171
      %p183 = scmp.eq.s32.totalorder %s30, 1
      %p184 = por %p182, %p183
      %p186 = scmp.ne.s32.totalorder %s171, %s185
      %p187 = scmp.eq.s32.totalorder %s30, 0
      %p188 = por %p186, %p187
      %s190 = sadd.s32 %s189, 1
      %p193 = scmp.eq.s32.totalorder %s24, 1
      %p194 = scmp.ne.s32.totalorder %s189, %s191
      %p195 = scmp.eq.s32.totalorder %s24, 0
      %p196 = por %p194, %p195
      %p197 = scmp.ne.s32.totalorder %s189, %s191
      %p198 = scmp.eq.s32.totalorder %s29, 1
      %p199 = por %p197, %p198
      %p200 = scmp.ne.s32.totalorder %s191, %s192
      %p201 = scmp.eq.s32.totalorder %s29, 0
      %p202 = por %p200, %p201
      %p203 = scmp.ne.s32.totalorder %s191, %s192
      %p204 = scmp.eq.s32.totalorder %s30, 1
      %p205 = por %p203, %p204
      %p207 = scmp.ne.s32.totalorder %s192, %s206
      %p208 = scmp.eq.s32.totalorder %s30, 0
      %p209 = por %p207, %p208
      %s211 = sadd.s32 %s210, 1
      %p214 = scmp.eq.s32.totalorder %s24, 1
      %p215 = scmp.ne.s32.totalorder %s210, %s212
      %p216 = scmp.eq.s32.totalorder %s24, 0
      %p217 = por %p215, %p216
      %p218 = scmp.ne.s32.totalorder %s210, %s212
      %p219 = scmp.eq.s32.totalorder %s29, 1
      %p220 = por %p218, %p219
      %p221 = scmp.ne.s32.totalorder %s212, %s213
      %p222 = scmp.eq.s32.totalorder %s29, 0
      %p223 = por %p221, %p222
      %p224 = scmp.ne.s32.totalorder %s212, %s213
      %p225 = scmp.eq.s32.totalorder %s30, 1
      %p226 = por %p224, %p225
      %p228 = scmp.ne.s32.totalorder %s213, %s227
      %p229 = scmp.eq.s32.totalorder %s30, 0
      %p230 = por %p228, %p229
      %s231 = ssub.s32 %s24, %s31
      %p232 = scmp.eq.s32.totalorder %s231, 0
      %s234 = sadd.s32 %s233, 1
      %s235 = scalar_select %p232, %s233, %s234
      %p238 = pneg %p232
      %p239 = scmp.eq.s32.totalorder %s24, 1
      %p240 = por %p238, %p239
      %p241 = scmp.ne.s32.totalorder %s233, %s236
      %p242 = scmp.eq.s32.totalorder %s24, 0
      %p243 = por %p241, %p242
      %p244 = scmp.ne.s32.totalorder %s233, %s236
      %p245 = scmp.eq.s32.totalorder %s29, 1
      %p246 = por %p244, %p245
      %p247 = scmp.ne.s32.totalorder %s236, %s237
      %p248 = scmp.eq.s32.totalorder %s29, 0
      %p249 = por %p247, %p248
      %p250 = scmp.ne.s32.totalorder %s236, %s237
      %p251 = scmp.eq.s32.totalorder %s30, 1
      %p252 = por %p250, %p251
      %p254 = scmp.ne.s32.totalorder %s237, %s253
      %p255 = scmp.eq.s32.totalorder %s30, 0
      %p256 = por %p254, %p255
      %p257 = scmp.le.s32.totalorder 1, %s24
      %p258 = scmp.lt.s32.totalorder %s24, 3
      %p259 = pnand %p257, %p258
      %p260 = pneg %p259
      // Predicated region
      $region9: #{tpu_custom_call.1} parent=5 // pred_check
        _
      $region10: #{tpu_custom_call.1} parent=5 // pred_check_branch
        %262 = sbr.rel (%p259) target = $region12
      $region11: #{tpu_custom_call.1} parent=5 // pred_region
        %s263 = ssub.s32 %s24, 1
        // Predicated region
        $region13: #{tpu_custom_call.1} parent=11 // pred_check
          %p264 = pneg %p97
        $region14: #{tpu_custom_call.1} parent=11 // pred_check_branch
          %266 = sbr.rel (%p264) target = $region16
        $region15: #{tpu_custom_call.1} parent=11 // pred_region
          _
        $region16: #{tpu_custom_call.1} parent=11 // pred_fallthru
          _
        // Predicated region
        $region17: #{tpu_custom_call.1} parent=11 // pred_check
          %p267 = pneg %p118
        $region18: #{tpu_custom_call.1} parent=11 // pred_check_branch
          %269 = sbr.rel (%p267) target = $region20
        $region19: #{tpu_custom_call.1} parent=11 // pred_region
          _
        $region20: #{tpu_custom_call.1} parent=11 // pred_fallthru
          _
        // Predicated region
        $region21: #{tpu_custom_call.1} parent=11 // pred_check
          %p270 = pneg %p139
        $region22: #{tpu_custom_call.1} parent=11 // pred_check_branch
          %272 = sbr.rel (%p270) target = $region24
        $region23: #{tpu_custom_call.1} parent=11 // pred_region
          _
        $region24: #{tpu_custom_call.1} parent=11 // pred_fallthru
          _
        // Predicated region
        $region25: #{tpu_custom_call.1} parent=11 // pred_check
          %p273 = pneg %p160
        $region26: #{tpu_custom_call.1} parent=11 // pred_check_branch
          %275 = sbr.rel (%p273) target = $region28
        $region27: #{tpu_custom_call.1} parent=11 // pred_region
          _
        $region28: #{tpu_custom_call.1} parent=11 // pred_fallthru
          _
        // Predicated region
        $region29: #{tpu_custom_call.1} parent=11 // pred_check
          %p276 = pneg %p181
        $region30: #{tpu_custom_call.1} parent=11 // pred_check_branch
          %278 = sbr.rel (%p276) target = $region32
        $region31: #{tpu_custom_call.1} parent=11 // pred_region
          _
        $region32: #{tpu_custom_call.1} parent=11 // pred_fallthru
          _
        // Predicated region
        $region33: #{tpu_custom_call.1} parent=11 // pred_check
          %p279 = pneg %p202
        $region34: #{tpu_custom_call.1} parent=11 // pred_check_branch
          %281 = sbr.rel (%p279) target = $region36
        $region35: #{tpu_custom_call.1} parent=11 // pred_region
          _
        $region36: #{tpu_custom_call.1} parent=11 // pred_fallthru
          _
        // Predicated region
        $region37: #{tpu_custom_call.1} parent=11 // pred_check
          %p282 = pneg %p223
        $region38: #{tpu_custom_call.1} parent=11 // pred_check_branch
          %284 = sbr.rel (%p282) target = $region40
        $region39: #{tpu_custom_call.1} parent=11 // pred_region
          %286 = vsyncadd [#allocation6], 0
          %s288 = sshll.u32 %s8, 4
          %s289 = int_to_ptr.hbm [resolvable:$true] %s288
          %s290 = sshll.u32 [#allocation7], 4
          %s291 = int_to_ptr.vmem [resolvable:$true] %s290
          %293 = dma.hbm_to_vmem [thread:$0]  %s289, 128, %s291, [#allocation6]
        $region40: #{tpu_custom_call.1} parent=11 // pred_fallthru
          _
      $region12: #{tpu_custom_call.1} parent=5 // pred_fallthru
        _
      %p294 = scmp.lt.s32.totalorder %s24, 2
      // Predicated region
      $region41: #{tpu_custom_call.1} parent=5 // pred_check
        %p295 = pneg %p294
      $region42: #{tpu_custom_call.1} parent=5 // pred_check_branch
        %297 = sbr.rel (%p295) target = $region44
      $region43: #{tpu_custom_call.1} parent=5 // pred_region
        // Predicated region
        $region45: #{tpu_custom_call.1} parent=43 // pred_check
          %p298 = pneg %p44
        $region46: #{tpu_custom_call.1} parent=43 // pred_check_branch
          %300 = sbr.rel (%p298) target = $region48
        $region47: #{tpu_custom_call.1} parent=43 // pred_region
          %s301 = sand.u32 %s34, 1
          %s302 = scalar_lea.sflag [#allocation3], %s301
          %s303 = sand.u32 %s34, 1
          %s304 = smul.addr %s303, 8
          %s305 = scalar_lea.vmem [#allocation2], %s304
          %307 = vsyncadd %s302, 0
          %s308 = smul.addr %s24, 8
          %s309 = scalar_lea.hbm %s0, %s308
          %s311 = sshll.u32 %s309, 4
          %s312 = int_to_ptr.hbm [resolvable:$true] %s311
          %s313 = sshll.u32 %s305, 4
          %s314 = int_to_ptr.vmem [resolvable:$true] %s313
          %316 = dma.hbm_to_vmem [thread:$0]  %s312, 128, %s314, %s302
        $region48: #{tpu_custom_call.1} parent=43 // pred_fallthru
          _
        // Predicated region
        $region49: #{tpu_custom_call.1} parent=43 // pred_check
          %p317 = pneg %p70
        $region50: #{tpu_custom_call.1} parent=43 // pred_check_branch
          %319 = sbr.rel (%p317) target = $region52
        $region51: #{tpu_custom_call.1} parent=43 // pred_region
          %s320 = sand.u32 %s24, 1
          %s321 = scalar_lea.sflag [#allocation6], %s320
          %s322 = sand.u32 %s60, 1
          %s323 = smul.addr %s322, 2
          %s324 = scalar_lea.vmem [#allocation5], %s323
          %326 = vsyncadd %s321, 0
          %s327 = smul.addr %s24, 2
          %s328 = scalar_lea.hbm %s1, %s327
          %s330 = sshll.u32 %s328, 4
          %s331 = int_to_ptr.hbm [resolvable:$true] %s330
          %s332 = sshll.u32 %s324, 4
          %s333 = int_to_ptr.vmem [resolvable:$true] %s332
          %335 = dma.hbm_to_vmem [thread:$0]  %s331, 32, %s333, %s321
        $region52: #{tpu_custom_call.1} parent=43 // pred_fallthru
          _
      $region44: #{tpu_custom_call.1} parent=5 // pred_fallthru
        _
      %p336 = scmp.le.s32.totalorder 1, %s24
      %p337 = scmp.lt.s32.totalorder %s24, 3
      %p338 = pnand %p336, %p337
      %p339 = pneg %p338
      // Predicated region
      $region53: #{tpu_custom_call.1} parent=5 // pred_check
        _
      $region54: #{tpu_custom_call.1} parent=5 // pred_check_branch
        %341 = sbr.rel (%p338) target = $region56
      $region55: #{tpu_custom_call.1} parent=5 // pred_region
        %s342 = ssub.s32 %s24, 1
        %s343 = sand.u32 %s37, 1
        %s344 = scalar_lea.sflag [#allocation3], %s343
        %s345 = sand.u32 %s37, 1
        %s346 = smul.addr %s345, 8
        %s347 = scalar_lea.vmem [#allocation2], %s346
        // Predicated region
        $region57: #{tpu_custom_call.1} parent=55 // pred_check
          %p348 = pneg %p50
        $region58: #{tpu_custom_call.1} parent=55 // pred_check_branch
          %350 = sbr.rel (%p348) target = $region60
        $region59: #{tpu_custom_call.1} parent=55 // pred_region
          %352 = dma.done %s344, 128
        $region60: #{tpu_custom_call.1} parent=55 // pred_fallthru
          _
        %s353 = sand.u32 %s29, 1
        %s354 = scalar_lea.sflag [#allocation6], %s353
        %s355 = sand.u32 %s63, 1
        %s356 = smul.addr %s355, 2
        %s357 = scalar_lea.vmem [#allocation5], %s356
        // Predicated region
        $region61: #{tpu_custom_call.1} parent=55 // pred_check
          %p358 = pneg %p76
        $region62: #{tpu_custom_call.1} parent=55 // pred_check_branch
          %360 = sbr.rel (%p358) target = $region64
        $region63: #{tpu_custom_call.1} parent=55 // pred_region
          %362 = dma.done %s354, 32
        $region64: #{tpu_custom_call.1} parent=55 // pred_fallthru
          _
        // Predicated region
        $region65: #{tpu_custom_call.1} parent=55 // pred_check
          %p363 = pneg %p223
        $region66: #{tpu_custom_call.1} parent=55 // pred_check_branch
          %365 = sbr.rel (%p363) target = $region68
        $region67: #{tpu_custom_call.1} parent=55 // pred_region
          %367 = dma.done [#allocation6], 128
        $region68: #{tpu_custom_call.1} parent=55 // pred_fallthru
          _
        %s368 = sand.u32 %s37, 1
        %s369 = scalar_lea.sflag [#allocation3], %s368
        %s370 = sand.u32 %s37, 1
        %s371 = smul.addr %s370, 8
        %s372 = scalar_lea.vmem [#allocation2], %s371
        %p373 = pneg %p50
        %p374 = pneg %p47
        %s375 = sand.u32 %s29, 1
        %s376 = scalar_lea.sflag [#allocation6], %s375
        %s377 = sand.u32 %s63, 1
        %s378 = smul.addr %s377, 2
        %s379 = scalar_lea.vmem [#allocation5], %s378
        %p380 = pneg %p76
        %p381 = pneg %p73
        %p382 = pneg %p97
        %p383 = pneg %p94
        %p384 = pneg %p118
        %p385 = pneg %p115
        %p386 = pneg %p139
        %p387 = pneg %p136
        %p388 = pneg %p160
        %p389 = pneg %p157
        %p390 = pneg %p181
        %p391 = pneg %p178
        %p392 = pneg %p202
        %p393 = pneg %p199
        %p394 = pneg %p223
        %p395 = pneg %p220
        %p396 = pneg %p249
        %p397 = pneg %p246
        %s398 = sand.u32 %s236, 1
        %s399 = scalar_lea.sflag [#allocation4], %s398
        %s400 = sand.u32 %s236, 1
        %s401 = smul.addr %s400, 8
        %s402 = scalar_lea.vmem [#allocation8], %s401
        %v403 = vld [vmem:[%s347] sm:$0xff]
        %v404 = vld [vmem:[%s357] sm:$0x3]
        %v405 = vunpack.c.0.s8 %v404
        %v406 = vcvt.s32.f32 %v405
        %vm407 = vcmp.eq.f32.partialorder %v406, 0.0
        %v408 = vsel %vm407, -1e+09, 0.0
        %v409 = vld [vmem:[%s2] sm:$0xff]
        %v410 = vld [vmem:[%s2 + $0x8] sm:$0xff]
        %v411 = vld [vmem:[%s2 + $0x10] sm:$0xff]
        %v412 = vld [vmem:[%s2 + $0x18] sm:$0xff]
        %v413 = vld [vmem:[%s3] sm:$0x1]
        %v415 = vperm.slane %v413, 0
        %vm417 = vcmask 261120
        %v419 = vsel %vm417, %v403, 0
        %421 = vmatpush.msra.mxu0 0.0
        %422 = vmatpush.msra.mxu0 0.0
        %423 = vmatpush.msra.mxu0 0.0
        %424 = vmatpush.msra.mxu0 0.0
        %425 = vmatpush.msra.mxu0 0.0
        %426 = vmatpush.msra.mxu0 0.0
        %427 = vmatpush.msra.mxu0 0.0
        %428 = vmatpush.msra.mxu0 0.0
        %429 = vmatpush.msra.mxu0 0.0
        %430 = vmatpush.msra.mxu0 0.0
        %431 = vmatpush.msra.mxu0 0.0
        %432 = vmatpush.msra.mxu0 0.0
        %433 = vmatpush.msra.mxu0 %v412
        %434 = vmatpush.msra.mxu0 %v411
        %435 = vmatpush.msra.mxu0 %v410
        %436 = vmatpush.msra.mxu0 %v409
        %437 = vmatmul.f32.gmra.mxu0 %v419
        %v438 = vpop.f32.mrf.mxu0
        %v439 = vadd.f32 %v415, %v438
        %440 = vdwg.mxu0
        %442 = vrot.lane.b32.xlu0 %v439, 96
        %v443 = vpop.permute.xlu0 %442
        %vm444 = vcmask 64512
        %v445 = vsel %vm444, %v439, 0
        %v447 = vsel %vm444, %v443, 0
        %449 = vmatpush.xpose.msra.mxu0 0.0
        %450 = vmatpush.xpose.msra.mxu0 0.0
        %451 = vmatpush.xpose.msra.mxu0 0.0
        %452 = vmatpush.xpose.msra.mxu0 0.0
        %453 = vmatpush.xpose.msra.mxu0 0.0
        %454 = vmatpush.xpose.msra.mxu0 0.0
        %455 = vmatpush.xpose.msra.mxu0 0.0
        %456 = vmatpush.xpose.msra.mxu0 0.0
        %457 = vmatpush.xpose.msra.mxu0 0.0
        %458 = vmatpush.xpose.msra.mxu0 0.0
        %459 = vmatpush.xpose.msra.mxu0 0.0
        %460 = vmatpush.xpose.msra.mxu0 0.0
        %461 = vmatpush.xpose.msra.mxu0 0.0
        %462 = vmatpush.xpose.msra.mxu0 0.0
        %463 = vmatpush.xpose.msra.mxu0 0.0
        %464 = vmatpush.xpose.msra.mxu0 %v447
        %465 = vmatmul.f32.gmra.mxu0 %v445
        %v466 = vpop.f32.mrf.mxu0
        %v467 = vadd.f32 %v408, %v466
        %468 = vdwg.mxu0
        %v469 = vsel %vm444, %v467, -inf
        %470 = vmax.xlane.f32.xlu0 %v469
        %v471 = vpop.xlane.xlu0 %470
        %v472 = vsub.f32 %v467, %v471
        %v473 = vmul.f32 %v472, 1.442695
        %v474 = vpow.pop %v473
        %v475 = vsel %vm444, %v474, 0.0
        %476 = vadd.xlane.f32.xlu0 %v475
        %v477 = vpop.xlane.xlu0 %476
        %v478 = vrcp.pop %v477
        %v479 = vmul.f32 %v474, %v478
        %480 = vrot.lane.b32.xlu0 %v439, 64
        %v481 = vpop.permute.xlu0 %480
        %v484 = vsel %vm444, %v479, 0
        %486 = vmatpush.msra.mxu0 0.0
        %487 = vmatpush.msra.mxu0 0.0
        %488 = vmatpush.msra.mxu0 0.0
        %489 = vmatpush.msra.mxu0 0.0
        %490 = vmatpush.msra.mxu0 0.0
        %491 = vmatpush.msra.mxu0 0.0
        %492 = vmatpush.msra.mxu0 0.0
        %493 = vmatpush.msra.mxu0 0.0
        %494 = vmatpush.msra.mxu0 0.0
        %495 = vmatpush.msra.mxu0 0.0
        %496 = vmatpush.msra.mxu0 0.0
        %497 = vmatpush.msra.mxu0 0.0
        %498 = vmatpush.msra.mxu0 0.0
        %499 = vmatpush.msra.mxu0 0.0
        %500 = vmatpush.msra.mxu0 0.0
        %501 = vmatpush.msra.mxu0 %v481
        %502 = vmatmul.f32.gmra.mxu0 %v484
        %v503 = vpop.f32.mrf.mxu0
        %v504 = vadd.f32 0.0, %v503
        %505 = vdwg.mxu0
        %v506 = vld [vmem:[%s4] sm:$0xff]
        %507 = vrot.lane.b32.xlu0 %v439, 120
        %v508 = vpop.permute.xlu0 %507
        %509 = vrot.lane.b32.xlu0 %v439, 88
        %v510 = vpop.permute.xlu0 %509
        %v511 = vsel %vm444, %v508, 0
        %v513 = vsel %vm444, %v510, 0
        %515 = vmatpush.xpose.msra.mxu0 0.0
        %516 = vmatpush.xpose.msra.mxu0 0.0
        %517 = vmatpush.xpose.msra.mxu0 0.0
        %518 = vmatpush.xpose.msra.mxu0 0.0
        %519 = vmatpush.xpose.msra.mxu0 0.0
        %520 = vmatpush.xpose.msra.mxu0 0.0
        %521 = vmatpush.xpose.msra.mxu0 0.0
        %522 = vmatpush.xpose.msra.mxu0 0.0
        %523 = vmatpush.xpose.msra.mxu0 0.0
        %524 = vmatpush.xpose.msra.mxu0 0.0
        %525 = vmatpush.xpose.msra.mxu0 0.0
        %526 = vmatpush.xpose.msra.mxu0 0.0
        %527 = vmatpush.xpose.msra.mxu0 0.0
        %528 = vmatpush.xpose.msra.mxu0 0.0
        %529 = vmatpush.xpose.msra.mxu0 0.0
        %530 = vmatpush.xpose.msra.mxu0 %v513
        %531 = vmatmul.f32.gmra.mxu0 %v511
        %v532 = vpop.f32.mrf.mxu0
        %v533 = vadd.f32 %v408, %v532
        %534 = vdwg.mxu0
        %v535 = vsel %vm444, %v533, -inf
        %536 = vmax.xlane.f32.xlu0 %v535
        %v537 = vpop.xlane.xlu0 %536
        %v538 = vsub.f32 %v533, %v537
        %v539 = vmul.f32 %v538, 1.442695
        %v540 = vpow.pop %v539
        %v541 = vsel %vm444, %v540, 0.0
        %542 = vadd.xlane.f32.xlu0 %v541
        %v543 = vpop.xlane.xlu0 %542
        %v544 = vrcp.pop %v543
        %v545 = vmul.f32 %v540, %v544
        %546 = vrot.lane.b32.xlu0 %v439, 56
        %v547 = vpop.permute.xlu0 %546
        %v550 = vsel %vm444, %v545, 0
        %552 = vmatpush.msra.mxu0 0.0
        %553 = vmatpush.msra.mxu0 0.0
        %554 = vmatpush.msra.mxu0 0.0
        %555 = vmatpush.msra.mxu0 0.0
        %556 = vmatpush.msra.mxu0 0.0
        %557 = vmatpush.msra.mxu0 0.0
        %558 = vmatpush.msra.mxu0 0.0
        %559 = vmatpush.msra.mxu0 0.0
        %560 = vmatpush.msra.mxu0 0.0
        %561 = vmatpush.msra.mxu0 0.0
        %562 = vmatpush.msra.mxu0 0.0
        %563 = vmatpush.msra.mxu0 0.0
        %564 = vmatpush.msra.mxu0 0.0
        %565 = vmatpush.msra.mxu0 0.0
        %566 = vmatpush.msra.mxu0 0.0
        %567 = vmatpush.msra.mxu0 %v547
        %568 = vmatmul.f32.gmra.mxu0 %v550
        %v569 = vpop.f32.mrf.mxu0
        %v570 = vadd.f32 0.0, %v569
        %571 = vdwg.mxu0
        %v572 = vld [vmem:[%s4 + $0x8] sm:$0xff]
        %v574 = vsel %vm444, %v570, 0
        %576 = vmatpush.msra.mxu0 0.0
        %577 = vmatpush.msra.mxu0 0.0
        %578 = vmatpush.msra.mxu0 0.0
        %579 = vmatpush.msra.mxu0 0.0
        %580 = vmatpush.msra.mxu0 0.0
        %581 = vmatpush.msra.mxu0 0.0
        %582 = vmatpush.msra.mxu0 0.0
        %583 = vmatpush.msra.mxu0 0.0
        %584 = vmatpush.msra.mxu0 0.0
        %585 = vmatpush.msra.mxu0 0.0
        %586 = vmatpush.msra.mxu0 0.0
        %587 = vmatpush.msra.mxu0 0.0
        %588 = vmatpush.msra.mxu0 0.0
        %589 = vmatpush.msra.mxu0 0.0
        %590 = vmatpush.msra.mxu0 0.0
        %591 = vmatpush.msra.mxu0 %v572
        %592 = vmatmul.f32.gmra.mxu0 %v574
        %v593 = vpop.f32.mrf.mxu0
        %v594 = vadd.f32 0.0, %v593
        %595 = vdwg.mxu0
        %v597 = vsel %vm444, %v504, 0
        %599 = vmatpush.msra.mxu0 0.0
        %600 = vmatpush.msra.mxu0 0.0
        %601 = vmatpush.msra.mxu0 0.0
        %602 = vmatpush.msra.mxu0 0.0
        %603 = vmatpush.msra.mxu0 0.0
        %604 = vmatpush.msra.mxu0 0.0
        %605 = vmatpush.msra.mxu0 0.0
        %606 = vmatpush.msra.mxu0 0.0
        %607 = vmatpush.msra.mxu0 0.0
        %608 = vmatpush.msra.mxu0 0.0
        %609 = vmatpush.msra.mxu0 0.0
        %610 = vmatpush.msra.mxu0 0.0
        %611 = vmatpush.msra.mxu0 0.0
        %612 = vmatpush.msra.mxu0 0.0
        %613 = vmatpush.msra.mxu0 0.0
        %614 = vmatpush.msra.mxu0 %v506
        %615 = vmatmul.f32.gmra.mxu0 %v597
        %v616 = vpop.f32.mrf.mxu0
        %v617 = vadd.f32 %v594, %v616
        %618 = vdwg.mxu0
        %619 = vrot.lane.b32.xlu0 %v439, 112
        %v620 = vpop.permute.xlu0 %619
        %621 = vrot.lane.b32.xlu0 %v439, 80
        %v622 = vpop.permute.xlu0 %621
        %v623 = vsel %vm444, %v620, 0
        %v625 = vsel %vm444, %v622, 0
        %627 = vmatpush.xpose.msra.mxu0 0.0
        %628 = vmatpush.xpose.msra.mxu0 0.0
        %629 = vmatpush.xpose.msra.mxu0 0.0
        %630 = vmatpush.xpose.msra.mxu0 0.0
        %631 = vmatpush.xpose.msra.mxu0 0.0
        %632 = vmatpush.xpose.msra.mxu0 0.0
        %633 = vmatpush.xpose.msra.mxu0 0.0
        %634 = vmatpush.xpose.msra.mxu0 0.0
        %635 = vmatpush.xpose.msra.mxu0 0.0
        %636 = vmatpush.xpose.msra.mxu0 0.0
        %637 = vmatpush.xpose.msra.mxu0 0.0
        %638 = vmatpush.xpose.msra.mxu0 0.0
        %639 = vmatpush.xpose.msra.mxu0 0.0
        %640 = vmatpush.xpose.msra.mxu0 0.0
        %641 = vmatpush.xpose.msra.mxu0 0.0
        %642 = vmatpush.xpose.msra.mxu0 %v625
        %643 = vmatmul.f32.gmra.mxu0 %v623
        %v644 = vpop.f32.mrf.mxu0
        %v645 = vadd.f32 %v408, %v644
        %646 = vdwg.mxu0
        %v647 = vsel %vm444, %v645, -inf
        %648 = vmax.xlane.f32.xlu0 %v647
        %v649 = vpop.xlane.xlu0 %648
        %v650 = vsub.f32 %v645, %v649
        %v651 = vmul.f32 %v650, 1.442695
        %v652 = vpow.pop %v651
        %v653 = vsel %vm444, %v652, 0.0
        %654 = vadd.xlane.f32.xlu0 %v653
        %v655 = vpop.xlane.xlu0 %654
        %v656 = vrcp.pop %v655
        %v657 = vmul.f32 %v652, %v656
        %658 = vrot.lane.b32.xlu0 %v439, 48
        %v659 = vpop.permute.xlu0 %658
        %v662 = vsel %vm444, %v657, 0
        %664 = vmatpush.msra.mxu0 0.0
        %665 = vmatpush.msra.mxu0 0.0
        %666 = vmatpush.msra.mxu0 0.0
        %667 = vmatpush.msra.mxu0 0.0
        %668 = vmatpush.msra.mxu0 0.0
        %669 = vmatpush.msra.mxu0 0.0
        %670 = vmatpush.msra.mxu0 0.0
        %671 = vmatpush.msra.mxu0 0.0
        %672 = vmatpush.msra.mxu0 0.0
        %673 = vmatpush.msra.mxu0 0.0
        %674 = vmatpush.msra.mxu0 0.0
        %675 = vmatpush.msra.mxu0 0.0
        %676 = vmatpush.msra.mxu0 0.0
        %677 = vmatpush.msra.mxu0 0.0
        %678 = vmatpush.msra.mxu0 0.0
        %679 = vmatpush.msra.mxu0 %v659
        %680 = vmatmul.f32.gmra.mxu0 %v662
        %v681 = vpop.f32.mrf.mxu0
        %v682 = vadd.f32 0.0, %v681
        %683 = vdwg.mxu0
        %v684 = vld [vmem:[%s4 + $0x10] sm:$0xff]
        %v686 = vsel %vm444, %v682, 0
        %688 = vmatpush.msra.mxu0 0.0
        %689 = vmatpush.msra.mxu0 0.0
        %690 = vmatpush.msra.mxu0 0.0
        %691 = vmatpush.msra.mxu0 0.0
        %692 = vmatpush.msra.mxu0 0.0
        %693 = vmatpush.msra.mxu0 0.0
        %694 = vmatpush.msra.mxu0 0.0
        %695 = vmatpush.msra.mxu0 0.0
        %696 = vmatpush.msra.mxu0 0.0
        %697 = vmatpush.msra.mxu0 0.0
        %698 = vmatpush.msra.mxu0 0.0
        %699 = vmatpush.msra.mxu0 0.0
        %700 = vmatpush.msra.mxu0 0.0
        %701 = vmatpush.msra.mxu0 0.0
        %702 = vmatpush.msra.mxu0 0.0
        %703 = vmatpush.msra.mxu0 %v684
        %704 = vmatmul.f32.gmra.mxu0 %v686
        %v705 = vpop.f32.mrf.mxu0
        %v706 = vadd.f32 0.0, %v705
        %707 = vdwg.mxu0
        %v708 = vadd.f32 %v617, %v706
        %709 = vrot.lane.b32.xlu0 %v439, 104
        %v710 = vpop.permute.xlu0 %709
        %711 = vrot.lane.b32.xlu0 %v439, 72
        %v712 = vpop.permute.xlu0 %711
        %v713 = vsel %vm444, %v710, 0
        %v715 = vsel %vm444, %v712, 0
        %717 = vmatpush.xpose.msra.mxu0 0.0
        %718 = vmatpush.xpose.msra.mxu0 0.0
        %719 = vmatpush.xpose.msra.mxu0 0.0
        %720 = vmatpush.xpose.msra.mxu0 0.0
        %721 = vmatpush.xpose.msra.mxu0 0.0
        %722 = vmatpush.xpose.msra.mxu0 0.0
        %723 = vmatpush.xpose.msra.mxu0 0.0
        %724 = vmatpush.xpose.msra.mxu0 0.0
        %725 = vmatpush.xpose.msra.mxu0 0.0
        %726 = vmatpush.xpose.msra.mxu0 0.0
        %727 = vmatpush.xpose.msra.mxu0 0.0
        %728 = vmatpush.xpose.msra.mxu0 0.0
        %729 = vmatpush.xpose.msra.mxu0 0.0
        %730 = vmatpush.xpose.msra.mxu0 0.0
        %731 = vmatpush.xpose.msra.mxu0 0.0
        %732 = vmatpush.xpose.msra.mxu0 %v715
        %733 = vmatmul.f32.gmra.mxu0 %v713
        %v734 = vpop.f32.mrf.mxu0
        %v735 = vadd.f32 %v408, %v734
        %736 = vdwg.mxu0
        %v737 = vsel %vm444, %v735, -inf
        %738 = vmax.xlane.f32.xlu0 %v737
        %v739 = vpop.xlane.xlu0 %738
        %v740 = vsub.f32 %v735, %v739
        %v741 = vmul.f32 %v740, 1.442695
        %v742 = vpow.pop %v741
        %v743 = vsel %vm444, %v742, 0.0
        %744 = vadd.xlane.f32.xlu0 %v743
        %v745 = vpop.xlane.xlu0 %744
        %v746 = vrcp.pop %v745
        %v747 = vmul.f32 %v742, %v746
        %748 = vrot.lane.b32.xlu0 %v439, 40
        %v749 = vpop.permute.xlu0 %748
        %v752 = vsel %vm444, %v747, 0
        %754 = vmatpush.msra.mxu0 0.0
        %755 = vmatpush.msra.mxu0 0.0
        %756 = vmatpush.msra.mxu0 0.0
        %757 = vmatpush.msra.mxu0 0.0
        %758 = vmatpush.msra.mxu0 0.0
        %759 = vmatpush.msra.mxu0 0.0
        %760 = vmatpush.msra.mxu0 0.0
        %761 = vmatpush.msra.mxu0 0.0
        %762 = vmatpush.msra.mxu0 0.0
        %763 = vmatpush.msra.mxu0 0.0
        %764 = vmatpush.msra.mxu0 0.0
        %765 = vmatpush.msra.mxu0 0.0
        %766 = vmatpush.msra.mxu0 0.0
        %767 = vmatpush.msra.mxu0 0.0
        %768 = vmatpush.msra.mxu0 0.0
        %769 = vmatpush.msra.mxu0 %v749
        %770 = vmatmul.f32.gmra.mxu0 %v752
        %v771 = vpop.f32.mrf.mxu0
        %v772 = vadd.f32 0.0, %v771
        %773 = vdwg.mxu0
        %v774 = vld [vmem:[%s4 + $0x18] sm:$0xff]
        %v776 = vsel %vm444, %v772, 0
        %778 = vmatpush.msra.mxu0 0.0
        %779 = vmatpush.msra.mxu0 0.0
        %780 = vmatpush.msra.mxu0 0.0
        %781 = vmatpush.msra.mxu0 0.0
        %782 = vmatpush.msra.mxu0 0.0
        %783 = vmatpush.msra.mxu0 0.0
        %784 = vmatpush.msra.mxu0 0.0
        %785 = vmatpush.msra.mxu0 0.0
        %786 = vmatpush.msra.mxu0 0.0
        %787 = vmatpush.msra.mxu0 0.0
        %788 = vmatpush.msra.mxu0 0.0
        %789 = vmatpush.msra.mxu0 0.0
        %790 = vmatpush.msra.mxu0 0.0
        %791 = vmatpush.msra.mxu0 0.0
        %792 = vmatpush.msra.mxu0 0.0
        %793 = vmatpush.msra.mxu0 %v774
        %794 = vmatmul.f32.gmra.mxu0 %v776
        %v795 = vpop.f32.mrf.mxu0
        %v796 = vadd.f32 0.0, %v795
        %797 = vdwg.mxu0
        %v798 = vadd.f32 %v708, %v796
        %v799 = vld [vmem:[#allocation7] sm:$0x1]
        %v800 = vld [vmem:[#allocation7 + $0x1] sm:$0x1]
        %v801 = vld [vmem:[#allocation7 + $0x2] sm:$0x1]
        %v802 = vld [vmem:[#allocation7 + $0x3] sm:$0x1]
        %v803 = vld [vmem:[#allocation7 + $0x4] sm:$0x1]
        %v804 = vld [vmem:[#allocation7 + $0x5] sm:$0x1]
        %v805 = vperm.slane %v799, 0
        %v806 = vadd.f32 %v798, %v805
        %v807 = vadd.f32 %v403, %v806
        %v808 = vsel %vm417, %v807, 0.0
        %809 = vadd.xlane.f32.xlu0 %v808
        %v810 = vpop.xlane.xlu0 %809
        %v811 = vrcp.pop 32.0
        %v812 = vmul.f32 32.0, %v811
        %v813 = vsub.f32 1.0, %v812
        %v814 = vmul.f32 %v811, %v813
        %v815 = vadd.f32 %v811, %v814
        %vm816 = vweird.f32 %v811
        %v817 = vsel %vm816, %v811, %v815
        %v818 = vmul.f32 %v810, %v817
        %v819 = vsub.f32 %v807, %v818
        %v820 = vmul.f32 %v819, %v819
        %v821 = vsel %vm417, %v820, 0.0
        %822 = vadd.xlane.f32.xlu0 %v821
        %v823 = vpop.xlane.xlu0 %822
        %v824 = vmul.f32 %v823, 0.032258064
        %v825 = vrsqrt.pop %v824
        %v826 = vmul.f32 %v825, %v824
        %v827 = vmul.f32 %v826, %v825
        %v828 = vmul.f32 0.5, %v827
        %v829 = vsub.f32 1.5, %v828
        %v830 = vmul.f32 %v825, %v829
        %v831 = vmul.f32 %v824, %v830
        %vm832 = vcmp.eq.f32.partialorder %v824, inf
        %v833 = vsel %vm832, %v824, %v831
        %vm834 = vcmp.eq.f32.partialorder %v824, 0.0
        %v835 = vand.u32 %v824, 2147483648
        %v836 = vsel %vm834, %v835, %v833
        %v837 = vadd.f32 %v836, 1e-06
        %v838 = vrcp.pop %v837
        %v839 = vmul.f32 %v837, %v838
        %v840 = vsub.f32 1.0, %v839
        %v841 = vmul.f32 %v838, %v840
        %v842 = vadd.f32 %v838, %v841
        %vm843 = vweird.f32 %v837
        %vm844 = vweird.f32 %v838
        %vm845 = vmor %vm843, %vm844
        %v846 = vsel %vm845, %v838, %v842
        %v847 = vand.u32 2147483647, %v837
        %vm848 = vcmp.eq.f32.partialorder %v847, 8.507059e+37
        %v849 = vand.u32 %v837, 2147483648
        %v850 = vor.u32 1.1754944e-38, %v849
        %v851 = vsel %vm848, %v850, %v846
        %v852 = vmul.f32 %v819, %v851
        %v853 = vperm.slane %v801, 0
        %v854 = vmul.f32 %v853, %v852
        %v855 = vperm.slane %v802, 0
        %v856 = vadd.f32 %v854, %v855
        %v857 = vld [vmem:[%s5] sm:$0xff]
        %v858 = vld [vmem:[%s5 + $0x8] sm:$0xff]
        %v859 = vld [vmem:[%s5 + $0x10] sm:$0xff]
        %v860 = vld [vmem:[%s5 + $0x18] sm:$0xff]
        %v861 = vld [vmem:[%s6] sm:$0x1]
        %v863 = vperm.slane %v861, 0
        %v866 = vsel %vm417, %v856, 0
        %868 = vmatpush.msra.mxu0 0.0
        %869 = vmatpush.msra.mxu0 0.0
        %870 = vmatpush.msra.mxu0 0.0
        %871 = vmatpush.msra.mxu0 0.0
        %872 = vmatpush.msra.mxu0 0.0
        %873 = vmatpush.msra.mxu0 0.0
        %874 = vmatpush.msra.mxu0 0.0
        %875 = vmatpush.msra.mxu0 0.0
        %876 = vmatpush.msra.mxu0 0.0
        %877 = vmatpush.msra.mxu0 0.0
        %878 = vmatpush.msra.mxu0 0.0
        %879 = vmatpush.msra.mxu0 0.0
        %880 = vmatpush.msra.mxu0 %v860
        %881 = vmatpush.msra.mxu0 %v859
        %882 = vmatpush.msra.mxu0 %v858
        %883 = vmatpush.msra.mxu0 %v857
        %884 = vmatmul.f32.gmra.mxu0 %v866
        %v885 = vpop.f32.mrf.mxu0
        %v886 = vadd.f32 %v863, %v885
        %887 = vdwg.mxu0
        %v888 = vmax.f32 %v886, 0.0
        %v889 = vld [vmem:[%s7] sm:$0xff]
        %v890 = vld [vmem:[%s7 + $0x8] sm:$0xff]
        %v891 = vld [vmem:[%s7 + $0x10] sm:$0xff]
        %v892 = vld [vmem:[%s7 + $0x18] sm:$0xff]
        %v893 = vld [vmem:[%s7 + $0x20] sm:$0xff]
        %v894 = vld [vmem:[%s7 + $0x28] sm:$0xff]
        %v895 = vld [vmem:[%s7 + $0x30] sm:$0xff]
        %v896 = vld [vmem:[%s7 + $0x38] sm:$0xff]
        %v897 = vperm.slane %v800, 0
        %vm898 = vcmask 523264
        %v900 = vsel %vm898, %v888, 0
        %902 = vmatpush.msra.mxu0 0.0
        %903 = vmatpush.msra.mxu0 0.0
        %904 = vmatpush.msra.mxu0 0.0
        %905 = vmatpush.msra.mxu0 0.0
        %906 = vmatpush.msra.mxu0 0.0
        %907 = vmatpush.msra.mxu0 0.0
        %908 = vmatpush.msra.mxu0 0.0
        %909 = vmatpush.msra.mxu0 0.0
        %910 = vmatpush.msra.mxu0 %v896
        %911 = vmatpush.msra.mxu0 %v895
        %912 = vmatpush.msra.mxu0 %v894
        %913 = vmatpush.msra.mxu0 %v893
        %914 = vmatpush.msra.mxu0 %v892
        %915 = vmatpush.msra.mxu0 %v891
        %916 = vmatpush.msra.mxu0 %v890
        %917 = vmatpush.msra.mxu0 %v889
        %918 = vmatmul.f32.gmra.mxu0 %v900
        %v919 = vpop.f32.mrf.mxu0
        %v920 = vadd.f32 %v897, %v919
        %921 = vdwg.mxu0
        %v922 = vadd.f32 %v856, %v920
        %v923 = vsel %vm417, %v922, 0.0
        %924 = vadd.xlane.f32.xlu0 %v923
        %v925 = vpop.xlane.xlu0 %924
        %v926 = vmul.f32 %v925, %v817
        %v927 = vsub.f32 %v922, %v926
        %v928 = vmul.f32 %v927, %v927
        %v929 = vsel %vm417, %v928, 0.0
        %930 = vadd.xlane.f32.xlu0 %v929
        %v931 = vpop.xlane.xlu0 %930
        %v932 = vmul.f32 %v931, 0.032258064
        %v933 = vrsqrt.pop %v932
        %v934 = vmul.f32 %v933, %v932
        %v935 = vmul.f32 %v934, %v933
        %v936 = vmul.f32 0.5, %v935
        %v937 = vsub.f32 1.5, %v936
        %v938 = vmul.f32 %v933, %v937
        %v939 = vmul.f32 %v932, %v938
        %vm940 = vcmp.eq.f32.partialorder %v932, inf
        %v941 = vsel %vm940, %v932, %v939
        %vm942 = vcmp.eq.f32.partialorder %v932, 0.0
        %v943 = vand.u32 %v932, 2147483648
        %v944 = vsel %vm942, %v943, %v941
        %v945 = vadd.f32 %v944, 1e-06
        %v946 = vrcp.pop %v945
        %v947 = vmul.f32 %v945, %v946
        %v948 = vsub.f32 1.0, %v947
        %v949 = vmul.f32 %v946, %v948
        %v950 = vadd.f32 %v946, %v949
        %vm951 = vweird.f32 %v945
        %vm952 = vweird.f32 %v946
        %vm953 = vmor %vm951, %vm952
        %v954 = vsel %vm953, %v946, %v950
        %v955 = vand.u32 2147483647, %v945
        %vm956 = vcmp.eq.f32.partialorder %v955, 8.507059e+37
        %v957 = vand.u32 %v945, 2147483648
        %v958 = vor.u32 1.1754944e-38, %v957
        %v959 = vsel %vm956, %v958, %v954
        %v960 = vmul.f32 %v927, %v959
        %v961 = vperm.slane %v803, 0
        %v962 = vmul.f32 %v961, %v960
        %v963 = vperm.slane %v804, 0
        %v964 = vadd.f32 %v962, %v963
        %965 = vst.msk [vmem:[%s402] sm:$0xff] %vm417, %v964
        %s966 = sand.u32 %s236, 1
        %s967 = scalar_lea.sflag [#allocation4], %s966
        %s968 = sand.u32 %s236, 1
        %s969 = smul.addr %s968, 8
        %s970 = scalar_lea.vmem [#allocation8], %s969
        // Predicated region
        $region69: #{tpu_custom_call.1} parent=55 // pred_check
          %p971 = pneg %p246
        $region70: #{tpu_custom_call.1} parent=55 // pred_check_branch
          %973 = sbr.rel (%p971) target = $region72
        $region71: #{tpu_custom_call.1} parent=55 // pred_region
          %975 = vsyncadd %s967, 0
          %s976 = smul.addr %s29, 8
          %s977 = scalar_lea.hbm %s9, %s976
          %s979 = sshll.u32 %s970, 4
          %s980 = int_to_ptr.vmem [resolvable:$true] %s979
          %s981 = sshll.u32 %s977, 4
          %s982 = int_to_ptr.hbm [resolvable:$true] %s981
          %984 = dma.vmem_to_hbm [thread:$0]  %s980, 128, %s982, %s967
        $region72: #{tpu_custom_call.1} parent=55 // pred_fallthru
          _
      $region56: #{tpu_custom_call.1} parent=5 // pred_fallthru
        _
      %p985 = scmp.le.s32.totalorder 2, %s24
      // Predicated region
      $region73: #{tpu_custom_call.1} parent=5 // pred_check
        %p986 = pneg %p985
      $region74: #{tpu_custom_call.1} parent=5 // pred_check_branch
        %988 = sbr.rel (%p986) target = $region76
      $region75: #{tpu_custom_call.1} parent=5 // pred_region
        %s989 = ssub.s32 %s24, 2
        // Predicated region
        $region77: #{tpu_custom_call.1} parent=75 // pred_check
          %p990 = pneg %p252
        $region78: #{tpu_custom_call.1} parent=75 // pred_check_branch
          %992 = sbr.rel (%p990) target = $region80
        $region79: #{tpu_custom_call.1} parent=75 // pred_region
          %s993 = sand.u32 %s237, 1
          %s994 = scalar_lea.sflag [#allocation4], %s993
          %s995 = sand.u32 %s237, 1
          %s996 = smul.addr %s995, 8
          %s997 = scalar_lea.vmem [#allocation8], %s996
          %999 = dma.done %s994, 128
        $region80: #{tpu_custom_call.1} parent=75 // pred_fallthru
          _
      $region76: #{tpu_custom_call.1} parent=5 // pred_fallthru
        _
    $region6: #{tpu_custom_call.1} parent=1 // loop_footer
      %s28 = sadd.s32 1, %s24
    $region7: #{tpu_custom_call.1} parent=1 // loop_footer_branch
      %23 = sbr.rel target = $region3
    $region8: #{tpu_custom_call.1} parent=1 // loop_exit
      _
    %1000 = vsyncpa [#allocation3], 1
    %s1001 = scalar_lea.sflag [#allocation3], 1
    %1002 = vsyncpa %s1001, 1
    %1003 = vsyncpa [#allocation6], 1
    %s1004 = scalar_lea.sflag [#allocation6], 1
    %1005 = vsyncpa %s1004, 1
    %1006 = vsyncpa [#allocation4], 1
    %s1007 = scalar_lea.sflag [#allocation4], 1
    %1008 = vsyncpa %s1007, 1

</llo_original>
